<compile_context>
chip_gen: v6e
topology: v6e:2x2x1
jax: 0.10.0
libtpu: 0.0.40
codegen_flags: <defaults>
</compile_context>

<pallas_src>
import math
import numpy as np
import jax
import jax.numpy as jnp
from jax.experimental import pallas as pl
from jax.experimental.pallas import tpu as pltpu


def make_block_kernel(NB, L, E, H, approx_recip=True):
    Dh = E // H
    M = NB * L

    def kernel(x_ref, winT_ref, bin_ref, woutT_ref, bout_ref,
               w1T_ref, b1_ref, w2T_ref, b2_ref, o_ref):
        wdt = winT_ref.dtype
        x = x_ref[...]                                   # (M, E) f32, batch folded into rows

        # ---- fused QKV projection (pre-transposed weights, q-scale folded) ----
        qkv = jnp.dot(x.astype(wdt), winT_ref[...],
                      preferred_element_type=jnp.float32) + bin_ref[...]
        q = qkv[:, 0 * E:1 * E].reshape(NB, L, E)
        k = qkv[:, 1 * E:2 * E].reshape(NB, L, E)
        v = qkv[:, 2 * E:3 * E].reshape(NB, L, E)

        # ---- multi-head attention: heads unrolled (H small), batched over NB.
        #      Attention-internal matmuls stay f32 (tiny; keeps softmax tight);
        #      only the weight matmuls use bf16 operands. ----
        heads = []
        for h in range(H):
            sl = slice(h * Dh, (h + 1) * Dh)
            qh = q[:, :, sl]                             # (NB, L, Dh)
            kh = k[:, :, sl]
            vh = v[:, :, sl]
            s = jnp.einsum('nqd,nkd->nqk', qh, kh,
                           preferred_element_type=jnp.float32)   # (NB, L, L)
            s = s - jnp.max(s, axis=-1, keepdims=True)
            e = jnp.exp(s)
            denom = jnp.sum(e, axis=-1, keepdims=True)
            if approx_recip:
                p = e * pl.reciprocal(denom, approx=True)
            else:
                p = e / denom
            heads.append(jnp.einsum('nqk,nkd->nqd', p, vh,
                                    preferred_element_type=jnp.float32))
        # Lane-concat head outputs (4 x Dh=8 -> E=32, one vreg) -> single
        # K=E out-proj matmul (no per-head accumulation chain).
        o_heads = jnp.concatenate(heads, axis=-1).reshape(M, E)    # (M, E) f32
        x1 = x + bout_ref[...] + jnp.dot(o_heads.astype(wdt), woutT_ref[...],
                                         preferred_element_type=jnp.float32)

        # ---- FeedForward: fc1 -> relu -> fc2, + residual ----
        hdn = jnp.dot(x1.astype(wdt), w1T_ref[...],
                      preferred_element_type=jnp.float32) + b1_ref[...]
        hdn = jnp.maximum(hdn, 0.0)
        y = jnp.dot(hdn.astype(wdt), w2T_ref[...],
                    preferred_element_type=jnp.float32) + b2_ref[...] + x1

        # ---- lane-dense store: (M, E) -> (NB, L*E), L*E multiple of 128 ----
        y3 = y.reshape(NB, L, E)
        y_ld = jnp.concatenate([y3[:, l, :] for l in range(L)], axis=-1)  # (NB, L*E)
        o_ref[...] = y_ld.astype(o_ref.dtype)

    return kernel


def _pick_batch_block(N, L, batch_block):
    """Largest divisor of N <= batch_block; prefer grid>=2 (v7x dual TC) only
    when each block has enough rows to beat the ~0.35us/step overhead."""
    divs = [d for d in range(1, min(batch_block, N) + 1) if N % d == 0]
    nb = max(divs)
    MIN_ROWS_PER_BLOCK = 256          # only split across TCs at real sizes
    if N // nb < 2:
        cands = [d for d in divs if (N // d) >= 2 and d * L >= MIN_ROWS_PER_BLOCK]
        if cands:
            nb = max(cands)
    return nb


def block_forward(x_lne, params, n_head, *, batch_block=8,
                  use_bf16_matmul=True, approx_softmax_recip=True):
    """x_lne: (L, N, E) float32 (PyTorch nn.MultiheadAttention default layout)."""
    L, N, E = x_lne.shape
    H = n_head
    Dh = E // H
    win, bin_, wout, bout, w1, b1, w2, b2 = params

    # Fold 1/sqrt(Dh) into the query third of in_proj (weight + bias) on host.
    scale = 1.0 / math.sqrt(Dh)
    win = win.at[:E, :].multiply(scale)
    bin_ = bin_.at[:E].multiply(scale)

    # Pre-transpose weights (contraction axis on sublanes, output axis on lanes).
    # bf16 operands by default (MXU-native); biases / elementwise stay f32.
    mm_dtype = jnp.bfloat16 if use_bf16_matmul else jnp.float32
    winT = win.T.astype(mm_dtype)        # (E, 3E)
    woutT = wout.T.astype(mm_dtype)      # (E, E)
    w1T = w1.T.astype(mm_dtype)          # (E, 4E)
    w2T = w2.T.astype(mm_dtype)          # (4E, E)
    bin2 = bin_.reshape(1, -1).astype(jnp.float32)
    bout2 = bout.reshape(1, -1).astype(jnp.float32)
    b12 = b1.reshape(1, -1).astype(jnp.float32)
    b22 = b2.reshape(1, -1).astype(jnp.float32)

    nb = _pick_batch_block(N, L, batch_block)
    grid = (N // nb,)
    M = nb * L

    # Fold batch into rows: (L, N, E) -> (N*L, E).
    x2d = jnp.transpose(x_lne, (1, 0, 2)).reshape(N * L, E)

    kernel = make_block_kernel(nb, L, E, H, approx_recip=approx_softmax_recip)
    # Full-resident weight specs (block index constant across the grid).
    # TODO(synk): at production E add pipeline_mode=pl.Buffered(1) to these and
    # tile fc1/fc2 over the 4E hidden dim (grid reduction axis + VMEM
    # accumulator) to fit v7x's 64 MiB VMEM.
    full = lambda a: pl.BlockSpec(a.shape, lambda b: (0,) * a.ndim)

    out_ld = pl.pallas_call(
        kernel,
        out_shape=jax.ShapeDtypeStruct((N, L * E), x_lne.dtype),   # lane-dense slab
        grid_spec=pltpu.PrefetchScalarGridSpec(
            num_scalar_prefetch=0,
            grid=grid,
            in_specs=[
                pl.BlockSpec((M, E), lambda b: (b, 0)),   # x rows for this batch block
                full(winT), full(bin2),                   # in_proj (pre-T, q-scaled)
                full(woutT), full(bout2),                 # out_proj
                full(w1T), full(b12),                     # fc1
                full(w2T), full(b22),                     # fc2
            ],
            out_specs=pl.BlockSpec((nb, L * E), lambda b: (b, 0)),
        ),
        compiler_params=pltpu.CompilerParams(
            dimension_semantics=("parallel",),
            vmem_limit_bytes=32 * 1024 * 1024),
    )(x2d, winT, bin2, woutT, bout2, w1T, b12, w2T, b22)

    # (N, L*E) -> (L, N, E)
    return out_ld.reshape(N, L, E).transpose(1, 0, 2)


def block_reference(x_lne, params, n_head):
    """Pure-JAX reference matching PyTorch semantics (eval mode, no dropout)."""
    win, bin_, wout, bout, w1, b1, w2, b2 = params
    L, N, E = x_lne.shape
    H = n_head
    Dh = E // H
    x = x_lne
    qkv = jnp.einsum('lne,fe->lnf', x, win) + bin_
    q, k, v = qkv[..., :E], qkv[..., E:2 * E], qkv[..., 2 * E:]

    def split_heads(t):  # (L, N, E) -> (N, H, L, Dh)
        return t.reshape(L, N, H, Dh).transpose(1, 2, 0, 3)

    qh, kh, vh = split_heads(q), split_heads(k), split_heads(v)
    s = jnp.einsum('nhqd,nhkd->nhqk', qh, kh) / math.sqrt(Dh)
    p = jax.nn.softmax(s, axis=-1)
    o = jnp.einsum('nhqk,nhkd->nhqd', p, vh)
    o = o.transpose(2, 0, 1, 3).reshape(L, N, E)
    attn_out = jnp.einsum('lne,fe->lnf', o, wout) + bout
    x1 = attn_out + x
    h = jax.nn.relu(jnp.einsum('lne,fe->lnf', x1, w1) + b1)
    return jnp.einsum('lnf,ef->lne', h, w2) + b2 + x1


if __name__ == "__main__":
    L, N, E, H = 8, 2, 32, 4   # seq, batch, n_embd, n_head

    key = jax.random.PRNGKey(0)
    ks = jax.random.split(key, 9)
    sc = 0.1
    params = (
        sc * jax.random.normal(ks[0], (3 * E, E), jnp.float32),   # in_proj_weight
        sc * jax.random.normal(ks[1], (3 * E,), jnp.float32),     # in_proj_bias
        sc * jax.random.normal(ks[2], (E, E), jnp.float32),       # out_proj.weight
        sc * jax.random.normal(ks[3], (E,), jnp.float32),         # out_proj.bias
        sc * jax.random.normal(ks[4], (4 * E, E), jnp.float32),   # fc1.weight
        sc * jax.random.normal(ks[5], (4 * E,), jnp.float32),     # fc1.bias
        sc * jax.random.normal(ks[6], (E, 4 * E), jnp.float32),   # fc2.weight
        sc * jax.random.normal(ks[7], (E,), jnp.float32),         # fc2.bias
    )
    x = jax.random.normal(ks[8], (L, N, E), jnp.float32)

    y = block_forward(x, params, H)          # bf16 MXU operands, f32 accumulate
    y = jax.block_until_ready(y)

    y_ref = block_reference(x, params, H)    # pure f32 reference
    # 2e-2 tolerance accounts for bf16 matmul operands + approx reciprocal;
    # block_forward(use_bf16_matmul=False, approx_softmax_recip=False) matches
    # at ~1e-5 if exact parity is ever needed.
    np.testing.assert_allclose(np.asarray(y), np.asarray(y_ref),
                               rtol=2e-2, atol=2e-2)
    print("KERNEL_OK")
</pallas_src>

<mosaic_0001>
module attributes {stable_mosaic.version = 11 : i64} {
  func.func @kernel(%arg0: i32, %arg1: memref<16x32xf32, #tpu.memory_space<vmem>>, %arg2: memref<32x96xbf16, #tpu.memory_space<vmem>>, %arg3: memref<1x96xf32, #tpu.memory_space<vmem>>, %arg4: memref<32x32xbf16, #tpu.memory_space<vmem>>, %arg5: memref<1x32xf32, #tpu.memory_space<vmem>>, %arg6: memref<32x128xbf16, #tpu.memory_space<vmem>>, %arg7: memref<1x128xf32, #tpu.memory_space<vmem>>, %arg8: memref<128x32xbf16, #tpu.memory_space<vmem>>, %arg9: memref<1x32xf32, #tpu.memory_space<vmem>>, %arg10: memref<2x256xf32, #tpu.memory_space<vmem>>) attributes {dimension_semantics = [#tpu.dimension_semantics<parallel>], iteration_bounds = array<i64: 1>, scalar_prefetch = 0 : i64, scratch_operands = 0 : i64, tpu.core_type = #tpu.core_type<tc>, window_params = [{transform_indices = @transform_0, window_bounds = array<i64: 16, 32>}, {pipeline_mode = #tpu.pipeline_mode<synchronous>, transform_indices = @transform_1, window_bounds = array<i64: 32, 96>}, {pipeline_mode = #tpu.pipeline_mode<synchronous>, transform_indices = @transform_2, window_bounds = array<i64: 1, 96>}, {pipeline_mode = #tpu.pipeline_mode<synchronous>, transform_indices = @transform_3, window_bounds = array<i64: 32, 32>}, {pipeline_mode = #tpu.pipeline_mode<synchronous>, transform_indices = @transform_4, window_bounds = array<i64: 1, 32>}, {pipeline_mode = #tpu.pipeline_mode<synchronous>, transform_indices = @transform_5, window_bounds = array<i64: 32, 128>}, {pipeline_mode = #tpu.pipeline_mode<synchronous>, transform_indices = @transform_6, window_bounds = array<i64: 1, 128>}, {pipeline_mode = #tpu.pipeline_mode<synchronous>, transform_indices = @transform_7, window_bounds = array<i64: 128, 32>}, {pipeline_mode = #tpu.pipeline_mode<synchronous>, transform_indices = @transform_8, window_bounds = array<i64: 1, 32>}, {transform_indices = @transform_9, window_bounds = array<i64: 2, 256>}]} {
    %c0 = arith.constant 0 : index
    %c0_0 = arith.constant 0 : index
    %0 = vector.load %arg1[%c0, %c0_0] : memref<16x32xf32, #tpu.memory_space<vmem>>, vector<16x32xf32>
    %1 = arith.truncf %0 : vector<16x32xf32> to vector<16x32xbf16>
    %c0_1 = arith.constant 0 : index
    %c0_2 = arith.constant 0 : index
    %2 = vector.load %arg2[%c0_1, %c0_2] : memref<32x96xbf16, #tpu.memory_space<vmem>>, vector<32x96xbf16>
    %cst = arith.constant dense<0.000000e+00> : vector<16x96xf32>
    %3 = tpu.matmul %1, %2, %cst {dimension_numbers = #tpu.dot_dimension_numbers<[1], [0], [0], [1], [0, 0, 1, 1], [], []>} : vector<16x32xbf16>, vector<32x96xbf16>, vector<16x96xf32> -> vector<16x96xf32>
    %c0_3 = arith.constant 0 : index
    %c0_4 = arith.constant 0 : index
    %4 = vector.load %arg3[%c0_3, %c0_4] : memref<1x96xf32, #tpu.memory_space<vmem>>, vector<1x96xf32>
    %5 = vector.broadcast %4 : vector<1x96xf32> to vector<16x96xf32>
    %6 = arith.addf %3, %5 : vector<16x96xf32>
    %7 = vector.extract_strided_slice %6 {offsets = [0, 0], sizes = [16, 32], strides = [1, 1]} : vector<16x96xf32> to vector<16x32xf32>
    %8 = vector.shape_cast %7 : vector<16x32xf32> to vector<2x8x32xf32>
    %9 = vector.extract_strided_slice %6 {offsets = [0, 32], sizes = [16, 32], strides = [1, 1]} : vector<16x96xf32> to vector<16x32xf32>
    %10 = vector.shape_cast %9 : vector<16x32xf32> to vector<2x8x32xf32>
    %11 = vector.extract_strided_slice %6 {offsets = [0, 64], sizes = [16, 32], strides = [1, 1]} : vector<16x96xf32> to vector<16x32xf32>
    %12 = vector.shape_cast %11 : vector<16x32xf32> to vector<2x8x32xf32>
    %13 = vector.extract_strided_slice %8 {offsets = [0, 0, 0], sizes = [2, 8, 8], strides = [1, 1, 1]} : vector<2x8x32xf32> to vector<2x8x8xf32>
    %14 = vector.extract_strided_slice %10 {offsets = [0, 0, 0], sizes = [2, 8, 8], strides = [1, 1, 1]} : vector<2x8x32xf32> to vector<2x8x8xf32>
    %15 = vector.extract_strided_slice %12 {offsets = [0, 0, 0], sizes = [2, 8, 8], strides = [1, 1, 1]} : vector<2x8x32xf32> to vector<2x8x8xf32>
    "tpu.trace_start"() <{level = 10 : i32, message = "nqd,nkd->nqk"}> : () -> ()
    %cst_5 = arith.constant dense<0.000000e+00> : vector<2x8x8xf32>
    %16 = tpu.matmul %13, %14, %cst_5 {dimension_numbers = #tpu.dot_dimension_numbers<[2], [2], [1], [1], [0, 0, 0, 1, 1, 1], [0], [0]>} : vector<2x8x8xf32>, vector<2x8x8xf32>, vector<2x8x8xf32> -> vector<2x8x8xf32>
    "tpu.trace_stop"() : () -> ()
    %cst_6 = arith.constant dense<0xFF800000> : vector<2x8xf32>
    %17 = vector.multi_reduction <maximumf>, %16, %cst_6 [2] : vector<2x8x8xf32> to vector<2x8xf32>
    %18 = vector.shape_cast %17 : vector<2x8xf32> to vector<2x8x1xf32>
    %19 = vector.broadcast %18 : vector<2x8x1xf32> to vector<2x8x8xf32>
    %20 = arith.subf %16, %19 : vector<2x8x8xf32>
    %21 = math.exp %20 : vector<2x8x8xf32>
    %cst_7 = arith.constant dense<0.000000e+00> : vector<2x8xf32>
    %22 = vector.multi_reduction <add>, %21, %cst_7 [2] : vector<2x8x8xf32> to vector<2x8xf32>
    %23 = vector.shape_cast %22 : vector<2x8xf32> to vector<2x8x1xf32>
    %24 = tpu.reciprocal %23 {approx = true} : vector<2x8x1xf32> -> vector<2x8x1xf32>
    %25 = vector.broadcast %24 : vector<2x8x1xf32> to vector<2x8x8xf32>
    %26 = arith.mulf %21, %25 : vector<2x8x8xf32>
    "tpu.trace_start"() <{level = 10 : i32, message = "nqk,nkd->nqd"}> : () -> ()
    %cst_8 = arith.constant dense<0.000000e+00> : vector<2x8x8xf32>
    %27 = tpu.matmul %26, %15, %cst_8 {dimension_numbers = #tpu.dot_dimension_numbers<[2], [1], [1], [2], [0, 0, 0, 1, 1, 2], [0], [0]>} : vector<2x8x8xf32>, vector<2x8x8xf32>, vector<2x8x8xf32> -> vector<2x8x8xf32>
    "tpu.trace_stop"() : () -> ()
    %28 = vector.extract_strided_slice %8 {offsets = [0, 0, 8], sizes = [2, 8, 8], strides = [1, 1, 1]} : vector<2x8x32xf32> to vector<2x8x8xf32>
    %29 = vector.extract_strided_slice %10 {offsets = [0, 0, 8], sizes = [2, 8, 8], strides = [1, 1, 1]} : vector<2x8x32xf32> to vector<2x8x8xf32>
    %30 = vector.extract_strided_slice %12 {offsets = [0, 0, 8], sizes = [2, 8, 8], strides = [1, 1, 1]} : vector<2x8x32xf32> to vector<2x8x8xf32>
    "tpu.trace_start"() <{level = 10 : i32, message = "nqd,nkd->nqk"}> : () -> ()
    %cst_9 = arith.constant dense<0.000000e+00> : vector<2x8x8xf32>
    %31 = tpu.matmul %28, %29, %cst_9 {dimension_numbers = #tpu.dot_dimension_numbers<[2], [2], [1], [1], [0, 0, 0, 1, 1, 1], [0], [0]>} : vector<2x8x8xf32>, vector<2x8x8xf32>, vector<2x8x8xf32> -> vector<2x8x8xf32>
    "tpu.trace_stop"() : () -> ()
    %cst_10 = arith.constant dense<0xFF800000> : vector<2x8xf32>
    %32 = vector.multi_reduction <maximumf>, %31, %cst_10 [2] : vector<2x8x8xf32> to vector<2x8xf32>
    %33 = vector.shape_cast %32 : vector<2x8xf32> to vector<2x8x1xf32>
    %34 = vector.broadcast %33 : vector<2x8x1xf32> to vector<2x8x8xf32>
    %35 = arith.subf %31, %34 : vector<2x8x8xf32>
    %36 = math.exp %35 : vector<2x8x8xf32>
    %cst_11 = arith.constant dense<0.000000e+00> : vector<2x8xf32>
    %37 = vector.multi_reduction <add>, %36, %cst_11 [2] : vector<2x8x8xf32> to vector<2x8xf32>
    %38 = vector.shape_cast %37 : vector<2x8xf32> to vector<2x8x1xf32>
    %39 = tpu.reciprocal %38 {approx = true} : vector<2x8x1xf32> -> vector<2x8x1xf32>
    %40 = vector.broadcast %39 : vector<2x8x1xf32> to vector<2x8x8xf32>
    %41 = arith.mulf %36, %40 : vector<2x8x8xf32>
    "tpu.trace_start"() <{level = 10 : i32, message = "nqk,nkd->nqd"}> : () -> ()
    %cst_12 = arith.constant dense<0.000000e+00> : vector<2x8x8xf32>
    %42 = tpu.matmul %41, %30, %cst_12 {dimension_numbers = #tpu.dot_dimension_numbers<[2], [1], [1], [2], [0, 0, 0, 1, 1, 2], [0], [0]>} : vector<2x8x8xf32>, vector<2x8x8xf32>, vector<2x8x8xf32> -> vector<2x8x8xf32>
    "tpu.trace_stop"() : () -> ()
    %43 = vector.extract_strided_slice %8 {offsets = [0, 0, 16], sizes = [2, 8, 8], strides = [1, 1, 1]} : vector<2x8x32xf32> to vector<2x8x8xf32>
    %44 = vector.extract_strided_slice %10 {offsets = [0, 0, 16], sizes = [2, 8, 8], strides = [1, 1, 1]} : vector<2x8x32xf32> to vector<2x8x8xf32>
    %45 = vector.extract_strided_slice %12 {offsets = [0, 0, 16], sizes = [2, 8, 8], strides = [1, 1, 1]} : vector<2x8x32xf32> to vector<2x8x8xf32>
    "tpu.trace_start"() <{level = 10 : i32, message = "nqd,nkd->nqk"}> : () -> ()
    %cst_13 = arith.constant dense<0.000000e+00> : vector<2x8x8xf32>
    %46 = tpu.matmul %43, %44, %cst_13 {dimension_numbers = #tpu.dot_dimension_numbers<[2], [2], [1], [1], [0, 0, 0, 1, 1, 1], [0], [0]>} : vector<2x8x8xf32>, vector<2x8x8xf32>, vector<2x8x8xf32> -> vector<2x8x8xf32>
    "tpu.trace_stop"() : () -> ()
    %cst_14 = arith.constant dense<0xFF800000> : vector<2x8xf32>
    %47 = vector.multi_reduction <maximumf>, %46, %cst_14 [2] : vector<2x8x8xf32> to vector<2x8xf32>
    %48 = vector.shape_cast %47 : vector<2x8xf32> to vector<2x8x1xf32>
    %49 = vector.broadcast %48 : vector<2x8x1xf32> to vector<2x8x8xf32>
    %50 = arith.subf %46, %49 : vector<2x8x8xf32>
    %51 = math.exp %50 : vector<2x8x8xf32>
    %cst_15 = arith.constant dense<0.000000e+00> : vector<2x8xf32>
    %52 = vector.multi_reduction <add>, %51, %cst_15 [2] : vector<2x8x8xf32> to vector<2x8xf32>
    %53 = vector.shape_cast %52 : vector<2x8xf32> to vector<2x8x1xf32>
    %54 = tpu.reciprocal %53 {approx = true} : vector<2x8x1xf32> -> vector<2x8x1xf32>
    %55 = vector.broadcast %54 : vector<2x8x1xf32> to vector<2x8x8xf32>
    %56 = arith.mulf %51, %55 : vector<2x8x8xf32>
    "tpu.trace_start"() <{level = 10 : i32, message = "nqk,nkd->nqd"}> : () -> ()
    %cst_16 = arith.constant dense<0.000000e+00> : vector<2x8x8xf32>
    %57 = tpu.matmul %56, %45, %cst_16 {dimension_numbers = #tpu.dot_dimension_numbers<[2], [1], [1], [2], [0, 0, 0, 1, 1, 2], [0], [0]>} : vector<2x8x8xf32>, vector<2x8x8xf32>, vector<2x8x8xf32> -> vector<2x8x8xf32>
    "tpu.trace_stop"() : () -> ()
    %58 = vector.extract_strided_slice %8 {offsets = [0, 0, 24], sizes = [2, 8, 8], strides = [1, 1, 1]} : vector<2x8x32xf32> to vector<2x8x8xf32>
    %59 = vector.extract_strided_slice %10 {offsets = [0, 0, 24], sizes = [2, 8, 8], strides = [1, 1, 1]} : vector<2x8x32xf32> to vector<2x8x8xf32>
    %60 = vector.extract_strided_slice %12 {offsets = [0, 0, 24], sizes = [2, 8, 8], strides = [1, 1, 1]} : vector<2x8x32xf32> to vector<2x8x8xf32>
    "tpu.trace_start"() <{level = 10 : i32, message = "nqd,nkd->nqk"}> : () -> ()
    %cst_17 = arith.constant dense<0.000000e+00> : vector<2x8x8xf32>
    %61 = tpu.matmul %58, %59, %cst_17 {dimension_numbers = #tpu.dot_dimension_numbers<[2], [2], [1], [1], [0, 0, 0, 1, 1, 1], [0], [0]>} : vector<2x8x8xf32>, vector<2x8x8xf32>, vector<2x8x8xf32> -> vector<2x8x8xf32>
    "tpu.trace_stop"() : () -> ()
    %cst_18 = arith.constant dense<0xFF800000> : vector<2x8xf32>
    %62 = vector.multi_reduction <maximumf>, %61, %cst_18 [2] : vector<2x8x8xf32> to vector<2x8xf32>
    %63 = vector.shape_cast %62 : vector<2x8xf32> to vector<2x8x1xf32>
    %64 = vector.broadcast %63 : vector<2x8x1xf32> to vector<2x8x8xf32>
    %65 = arith.subf %61, %64 : vector<2x8x8xf32>
    %66 = math.exp %65 : vector<2x8x8xf32>
    %cst_19 = arith.constant dense<0.000000e+00> : vector<2x8xf32>
    %67 = vector.multi_reduction <add>, %66, %cst_19 [2] : vector<2x8x8xf32> to vector<2x8xf32>
    %68 = vector.shape_cast %67 : vector<2x8xf32> to vector<2x8x1xf32>
    %69 = tpu.reciprocal %68 {approx = true} : vector<2x8x1xf32> -> vector<2x8x1xf32>
    %70 = vector.broadcast %69 : vector<2x8x1xf32> to vector<2x8x8xf32>
    %71 = arith.mulf %66, %70 : vector<2x8x8xf32>
    "tpu.trace_start"() <{level = 10 : i32, message = "nqk,nkd->nqd"}> : () -> ()
    %cst_20 = arith.constant dense<0.000000e+00> : vector<2x8x8xf32>
    %72 = tpu.matmul %71, %60, %cst_20 {dimension_numbers = #tpu.dot_dimension_numbers<[2], [1], [1], [2], [0, 0, 0, 1, 1, 2], [0], [0]>} : vector<2x8x8xf32>, vector<2x8x8xf32>, vector<2x8x8xf32> -> vector<2x8x8xf32>
    "tpu.trace_stop"() : () -> ()
    %73 = tpu.concatenate %27, %42, %57, %72 in 2 : vector<2x8x8xf32>, vector<2x8x8xf32>, vector<2x8x8xf32>, vector<2x8x8xf32> -> vector<2x8x32xf32>
    %74 = vector.shape_cast %73 : vector<2x8x32xf32> to vector<16x32xf32>
    %c0_21 = arith.constant 0 : index
    %c0_22 = arith.constant 0 : index
    %75 = vector.load %arg5[%c0_21, %c0_22] : memref<1x32xf32, #tpu.memory_space<vmem>>, vector<1x32xf32>
    %76 = vector.broadcast %75 : vector<1x32xf32> to vector<16x32xf32>
    %77 = arith.addf %0, %76 : vector<16x32xf32>
    %78 = arith.truncf %74 : vector<16x32xf32> to vector<16x32xbf16>
    %c0_23 = arith.constant 0 : index
    %c0_24 = arith.constant 0 : index
    %79 = vector.load %arg4[%c0_23, %c0_24] : memref<32x32xbf16, #tpu.memory_space<vmem>>, vector<32x32xbf16>
    %cst_25 = arith.constant dense<0.000000e+00> : vector<16x32xf32>
    %80 = tpu.matmul %78, %79, %cst_25 {dimension_numbers = #tpu.dot_dimension_numbers<[1], [0], [0], [1], [0, 0, 1, 1], [], []>} : vector<16x32xbf16>, vector<32x32xbf16>, vector<16x32xf32> -> vector<16x32xf32>
    %81 = arith.addf %77, %80 : vector<16x32xf32>
    %82 = arith.truncf %81 : vector<16x32xf32> to vector<16x32xbf16>
    %c0_26 = arith.constant 0 : index
    %c0_27 = arith.constant 0 : index
    %83 = vector.load %arg6[%c0_26, %c0_27] : memref<32x128xbf16, #tpu.memory_space<vmem>>, vector<32x128xbf16>
    %cst_28 = arith.constant dense<0.000000e+00> : vector<16x128xf32>
    %84 = tpu.matmul %82, %83, %cst_28 {dimension_numbers = #tpu.dot_dimension_numbers<[1], [0], [0], [1], [0, 0, 1, 1], [], []>} : vector<16x32xbf16>, vector<32x128xbf16>, vector<16x128xf32> -> vector<16x128xf32>
    %c0_29 = arith.constant 0 : index
    %c0_30 = arith.constant 0 : index
    %85 = vector.load %arg7[%c0_29, %c0_30] : memref<1x128xf32, #tpu.memory_space<vmem>>, vector<1x128xf32>
    %86 = vector.broadcast %85 : vector<1x128xf32> to vector<16x128xf32>
    %87 = arith.addf %84, %86 : vector<16x128xf32>
    %cst_31 = arith.constant 0.000000e+00 : f32
    %88 = vector.broadcast %cst_31 : f32 to vector<16x128xf32>
    %89 = arith.maximumf %87, %88 : vector<16x128xf32>
    %90 = arith.truncf %89 : vector<16x128xf32> to vector<16x128xbf16>
    %c0_32 = arith.constant 0 : index
    %c0_33 = arith.constant 0 : index
    %91 = vector.load %arg8[%c0_32, %c0_33] : memref<128x32xbf16, #tpu.memory_space<vmem>>, vector<128x32xbf16>
    %cst_34 = arith.constant dense<0.000000e+00> : vector<16x32xf32>
    %92 = tpu.matmul %90, %91, %cst_34 {dimension_numbers = #tpu.dot_dimension_numbers<[1], [0], [0], [1], [0, 0, 1, 1], [], []>} : vector<16x128xbf16>, vector<128x32xbf16>, vector<16x32xf32> -> vector<16x32xf32>
    %c0_35 = arith.constant 0 : index
    %c0_36 = arith.constant 0 : index
    %93 = vector.load %arg9[%c0_35, %c0_36] : memref<1x32xf32, #tpu.memory_space<vmem>>, vector<1x32xf32>
    %94 = vector.broadcast %93 : vector<1x32xf32> to vector<16x32xf32>
    %95 = arith.addf %92, %94 : vector<16x32xf32>
    %96 = arith.addf %95, %81 : vector<16x32xf32>
    %97 = vector.shape_cast %96 : vector<16x32xf32> to vector<2x8x32xf32>
    %98 = vector.extract_strided_slice %97 {offsets = [0, 0, 0], sizes = [2, 1, 32], strides = [1, 1, 1]} : vector<2x8x32xf32> to vector<2x1x32xf32>
    %99 = vector.shape_cast %98 : vector<2x1x32xf32> to vector<2x32xf32>
    %100 = vector.extract_strided_slice %97 {offsets = [0, 1, 0], sizes = [2, 1, 32], strides = [1, 1, 1]} : vector<2x8x32xf32> to vector<2x1x32xf32>
    %101 = vector.shape_cast %100 : vector<2x1x32xf32> to vector<2x32xf32>
    %102 = vector.extract_strided_slice %97 {offsets = [0, 2, 0], sizes = [2, 1, 32], strides = [1, 1, 1]} : vector<2x8x32xf32> to vector<2x1x32xf32>
    %103 = vector.shape_cast %102 : vector<2x1x32xf32> to vector<2x32xf32>
    %104 = vector.extract_strided_slice %97 {offsets = [0, 3, 0], sizes = [2, 1, 32], strides = [1, 1, 1]} : vector<2x8x32xf32> to vector<2x1x32xf32>
    %105 = vector.shape_cast %104 : vector<2x1x32xf32> to vector<2x32xf32>
    %106 = vector.extract_strided_slice %97 {offsets = [0, 4, 0], sizes = [2, 1, 32], strides = [1, 1, 1]} : vector<2x8x32xf32> to vector<2x1x32xf32>
    %107 = vector.shape_cast %106 : vector<2x1x32xf32> to vector<2x32xf32>
    %108 = vector.extract_strided_slice %97 {offsets = [0, 5, 0], sizes = [2, 1, 32], strides = [1, 1, 1]} : vector<2x8x32xf32> to vector<2x1x32xf32>
    %109 = vector.shape_cast %108 : vector<2x1x32xf32> to vector<2x32xf32>
    %110 = vector.extract_strided_slice %97 {offsets = [0, 6, 0], sizes = [2, 1, 32], strides = [1, 1, 1]} : vector<2x8x32xf32> to vector<2x1x32xf32>
    %111 = vector.shape_cast %110 : vector<2x1x32xf32> to vector<2x32xf32>
    %112 = vector.extract_strided_slice %97 {offsets = [0, 7, 0], sizes = [2, 1, 32], strides = [1, 1, 1]} : vector<2x8x32xf32> to vector<2x1x32xf32>
    %113 = vector.shape_cast %112 : vector<2x1x32xf32> to vector<2x32xf32>
    %114 = tpu.concatenate %99, %101, %103, %105, %107, %109, %111, %113 in 1 : vector<2x32xf32>, vector<2x32xf32>, vector<2x32xf32>, vector<2x32xf32>, vector<2x32xf32>, vector<2x32xf32>, vector<2x32xf32>, vector<2x32xf32> -> vector<2x256xf32>
    %c0_37 = arith.constant 0 : index
    %c0_38 = arith.constant 0 : index
    %115 = vector.load %arg10[%c0_37, %c0_38] : memref<2x256xf32, #tpu.memory_space<vmem>>, vector<2x256xf32>
    tpu.vector_store %arg10[%c0_37, %c0_38], %114 {strides = array<i32>} : memref<2x256xf32, #tpu.memory_space<vmem>>, vector<2x256xf32>,
    return
  }
  func.func @transform_0(%arg0: i32) -> (i32, i32) {
    %c0_i32 = arith.constant 0 : i32
    %c0_i32_0 = arith.constant 0 : i32
    return %arg0, %c0_i32 : i32, i32
  }
  func.func @transform_1(%arg0: i32) -> (i32, i32) {
    %c0_i32 = arith.constant 0 : i32
    %c0_i32_0 = arith.constant 0 : i32
    %c0_i32_1 = arith.constant 0 : i32
    return %c0_i32, %c0_i32_0 : i32, i32
  }
  func.func @transform_2(%arg0: i32) -> (i32, i32) {
    %c0_i32 = arith.constant 0 : i32
    %c0_i32_0 = arith.constant 0 : i32
    %c0_i32_1 = arith.constant 0 : i32
    return %c0_i32, %c0_i32_0 : i32, i32
  }
  func.func @transform_3(%arg0: i32) -> (i32, i32) {
    %c0_i32 = arith.constant 0 : i32
    %c0_i32_0 = arith.constant 0 : i32
    %c0_i32_1 = arith.constant 0 : i32
    return %c0_i32, %c0_i32_0 : i32, i32
  }
  func.func @transform_4(%arg0: i32) -> (i32, i32) {
    %c0_i32 = arith.constant 0 : i32
    %c0_i32_0 = arith.constant 0 : i32
    %c0_i32_1 = arith.constant 0 : i32
    return %c0_i32, %c0_i32_0 : i32, i32
  }
  func.func @transform_5(%arg0: i32) -> (i32, i32) {
    %c0_i32 = arith.constant 0 : i32
    %c0_i32_0 = arith.constant 0 : i32
    %c0_i32_1 = arith.constant 0 : i32
    return %c0_i32, %c0_i32_0 : i32, i32
  }
  func.func @transform_6(%arg0: i32) -> (i32, i32) {
    %c0_i32 = arith.constant 0 : i32
    %c0_i32_0 = arith.constant 0 : i32
    %c0_i32_1 = arith.constant 0 : i32
    return %c0_i32, %c0_i32_0 : i32, i32
  }
  func.func @transform_7(%arg0: i32) -> (i32, i32) {
    %c0_i32 = arith.constant 0 : i32
    %c0_i32_0 = arith.constant 0 : i32
    %c0_i32_1 = arith.constant 0 : i32
    return %c0_i32, %c0_i32_0 : i32, i32
  }
  func.func @transform_8(%arg0: i32) -> (i32, i32) {
    %c0_i32 = arith.constant 0 : i32
    %c0_i32_0 = arith.constant 0 : i32
    %c0_i32_1 = arith.constant 0 : i32
    return %c0_i32, %c0_i32_0 : i32, i32
  }
  func.func @transform_9(%arg0: i32) -> (i32, i32) {
    %c0_i32 = arith.constant 0 : i32
    %c0_i32_0 = arith.constant 0 : i32
    return %arg0, %c0_i32 : i32, i32
  }
}

</mosaic_0001>

<llo_original>
// kernel: tpu_custom_call.1
$region0: #{tpu_custom_call.1}
  #allocation0 [shape = 'u32[]', space=smem, size = 0x4, offset = 0x4, fixed_abs, tag = 'smem constant byte address 0x4 - core index']
  #allocation1 [shape = 'u32[144,128]{1,0:T(1,128)}', space=vmem, size = 0x12000, scoped, tag = 'internal scratch']
  %s0 = inlined_call_operand.vmem [shape: f32[16,32], index: 0, kind: input, shape index: {}]
  %s1 = inlined_call_operand.vmem [shape: bf16[32,96], index: 1, kind: input, shape index: {}]
  %s2 = inlined_call_operand.vmem [shape: f32[1,96], index: 2, kind: input, shape index: {}]
  %s3 = inlined_call_operand.vmem [shape: bf16[32,32], index: 3, kind: input, shape index: {}]
  %s4 = inlined_call_operand.vmem [shape: f32[1,32], index: 4, kind: input, shape index: {}]
  %s5 = inlined_call_operand.vmem [shape: bf16[32,128], index: 5, kind: input, shape index: {}]
  %s6 = inlined_call_operand.vmem [shape: f32[1,128], index: 6, kind: input, shape index: {}]
  %s7 = inlined_call_operand.vmem [shape: bf16[128,32], index: 7, kind: input, shape index: {}]
  %s8 = inlined_call_operand.vmem [shape: f32[1,32], index: 8, kind: input, shape index: {}]
  %s9 = inlined_call_operand.hbm [shape: f32[2,256], index: 9, kind: output, shape index: {}]
  %s10 = sld [smem:[#allocation0]]
  $region46: #{tpu_custom_call.1} parent=0
    _
  %s12 = ssub.s32 1, %s10
  %s13 = scalar_select 0, %s12, %s10
  $region1: #{tpu_custom_call.1} parent=0
    #allocation2 [shape = 'u8[2048]{0}', space=vmem, size = 0x800, scoped, tag = 'output window, operand 0, single buffered']
    #allocation3 [shape = 's32[1]{0}', space=sflag, size = 0x4, scoped, tag = 'scoped memory for tpu_custom_call.1']
    %14 = vsyncpa [#allocation3], 0
    // Predicated region
    $region2: #{tpu_custom_call.1} parent=1 // pred_check
      _
    $region3: #{tpu_custom_call.1} parent=1 // pred_check_branch
      %16 = sbr.rel (0) target = $region5
    $region4: #{tpu_custom_call.1} parent=1 // pred_region
      _
    $region5: #{tpu_custom_call.1} parent=1 // pred_fallthru
      _
    // Predicated region
    $region6: #{tpu_custom_call.1} parent=1 // pred_check
      _
    $region7: #{tpu_custom_call.1} parent=1 // pred_check_branch
      %18 = sbr.rel (0) target = $region9
    $region8: #{tpu_custom_call.1} parent=1 // pred_region
      _
    $region9: #{tpu_custom_call.1} parent=1 // pred_fallthru
      _
    // Predicated region
    $region10: #{tpu_custom_call.1} parent=1 // pred_check
      _
    $region11: #{tpu_custom_call.1} parent=1 // pred_check_branch
      %20 = sbr.rel (0) target = $region13
    $region12: #{tpu_custom_call.1} parent=1 // pred_region
      _
    $region13: #{tpu_custom_call.1} parent=1 // pred_fallthru
      _
    // Predicated region
    $region14: #{tpu_custom_call.1} parent=1 // pred_check
      _
    $region15: #{tpu_custom_call.1} parent=1 // pred_check_branch
      %22 = sbr.rel (0) target = $region17
    $region16: #{tpu_custom_call.1} parent=1 // pred_region
      _
    $region17: #{tpu_custom_call.1} parent=1 // pred_fallthru
      _
    // Predicated region
    $region18: #{tpu_custom_call.1} parent=1 // pred_check
      _
    $region19: #{tpu_custom_call.1} parent=1 // pred_check_branch
      %24 = sbr.rel (0) target = $region21
    $region20: #{tpu_custom_call.1} parent=1 // pred_region
      _
    $region21: #{tpu_custom_call.1} parent=1 // pred_fallthru
      _
    // Predicated region
    $region22: #{tpu_custom_call.1} parent=1 // pred_check
      _
    $region23: #{tpu_custom_call.1} parent=1 // pred_check_branch
      %26 = sbr.rel (0) target = $region25
    $region24: #{tpu_custom_call.1} parent=1 // pred_region
      _
    $region25: #{tpu_custom_call.1} parent=1 // pred_fallthru
      _
    // Predicated region
    $region26: #{tpu_custom_call.1} parent=1 // pred_check
      _
    $region27: #{tpu_custom_call.1} parent=1 // pred_check_branch
      %28 = sbr.rel (0) target = $region29
    $region28: #{tpu_custom_call.1} parent=1 // pred_region
      _
    $region29: #{tpu_custom_call.1} parent=1 // pred_fallthru
      _
    // Predicated region
    $region30: #{tpu_custom_call.1} parent=1 // pred_check
      _
    $region31: #{tpu_custom_call.1} parent=1 // pred_check_branch
      %30 = sbr.rel (0) target = $region33
    $region32: #{tpu_custom_call.1} parent=1 // pred_region
      _
    $region33: #{tpu_custom_call.1} parent=1 // pred_fallthru
      _
    // Predicated region
    $region34: #{tpu_custom_call.1} parent=1 // pred_check
      _
    $region35: #{tpu_custom_call.1} parent=1 // pred_check_branch
      %32 = sbr.rel (0) target = $region37
    $region36: #{tpu_custom_call.1} parent=1 // pred_region
      _
    $region37: #{tpu_custom_call.1} parent=1 // pred_fallthru
      _
    %v34 = vld [vmem:[%s0] sm:$0xff]
    %v35 = vld [vmem:[%s0 + $0x8] sm:$0xff]
    %v36 = vpack.c.bf16 %v35, %v34
    %v37 = vld [vmem:[%s1] sm:$0xf]
    %v38 = vld [vmem:[%s1 + $0x4] sm:$0xf]
    %v39 = vld [vmem:[%s1 + $0x8] sm:$0xf]
    %v40 = vld [vmem:[%s1 + $0xc] sm:$0xf]
    %v41 = vld [vmem:[%s2] sm:$0x1]
    %v43 = vlaneseq
    %v44 = vshrl.u32 %v43, 7
    %v45 = vsub.s32 0, %v44
    %v46 = vrot.slane %v41, %v45
    %v52 = vunpack.c.l.b16 %v37
    %v53 = vunpack.c.l.b16 %v38
    %v54 = vunpack.c.l.b16 %v39
    %v55 = vunpack.c.l.b16 %v40
    %v56 = vpack.c.b16 %v53, %v52
    %v57 = vpack.c.b16 %v55, %v54
    %vm60 = vcmask 261120
    %v62 = vsel %vm60, %v36, 0
    %64 = vmatprep.subr.bf16.mxu0 0
    %65 = vmatpush1.bf16.msra.mxu0 0
    %66 = vmatprep.subr.bf16.mxu0 0
    %67 = vmatpush1.bf16.msra.mxu0 0
    %68 = vmatprep.subr.bf16.mxu0 0
    %69 = vmatpush1.bf16.msra.mxu0 0
    %70 = vmatprep.subr.bf16.mxu0 0
    %71 = vmatpush1.bf16.msra.mxu0 0
    %72 = vmatprep.subr.bf16.mxu0 0
    %73 = vmatpush1.bf16.msra.mxu0 0
    %74 = vmatprep.subr.bf16.mxu0 0
    %75 = vmatpush1.bf16.msra.mxu0 0
    %76 = vmatprep.subr.bf16.mxu0 0
    %77 = vmatpush1.bf16.msra.mxu0 %v57
    %78 = vmatprep.subr.bf16.mxu0 0
    %79 = vmatpush1.bf16.msra.mxu0 %v56
    %80 = vmatprep.subr.bf16.mxu0 0
    %81 = vmatpush2.bf16.msra.mxu0 0
    %82 = vmatprep.subr.bf16.mxu0 0
    %83 = vmatpush2.bf16.msra.mxu0 0
    %84 = vmatprep.subr.bf16.mxu0 0
    %85 = vmatpush2.bf16.msra.mxu0 0
    %86 = vmatprep.subr.bf16.mxu0 0
    %87 = vmatpush2.bf16.msra.mxu0 0
    %88 = vmatprep.subr.bf16.mxu0 0
    %89 = vmatpush2.bf16.msra.mxu0 0
    %90 = vmatprep.subr.bf16.mxu0 0
    %91 = vmatpush2.bf16.msra.mxu0 0
    %92 = vmatprep.subr.bf16.mxu0 0
    %93 = vmatpush2.bf16.msra.mxu0 0
    %94 = vmatprep.subr.bf16.mxu0 0
    %95 = vmatpush2.bf16.msra.mxu0 0
    %96 = vmatprep.mubr.bf16.mxu0 0
    %97 = vmatmul.mubr.bf16.gmra.mxu0 %v62
    %v98 = vpop.f32.mrf.mxu0
    %v99 = vadd.f32 %v46, %v98
    %v100 = vpop.f32.mrf.mxu0
    %v101 = vpop.f32.mrf.mxu0
    %v102 = vadd.f32 %v46, %v101
    %v103 = vpop.f32.mrf.mxu0
    %104 = vdwg.mxu0
    %106 = vrot.lane.b32.xlu0 %v99, 96
    %v107 = vpop.permute.xlu0 %106
    %vm108 = vcmask 64512
    %v109 = vsel %vm108, %v99, 0
    %v111 = vsel %vm108, %v107, 0
    %113 = vmatprep.subr.mxu0 0.0
    %114 = vmatpush1.xpose.msra.mxu0 0.0
    %115 = vmatprep.subr.mxu0 0.0
    %116 = vmatpush1.xpose.msra.mxu0 0.0
    %117 = vmatprep.subr.mxu0 0.0
    %118 = vmatpush1.xpose.msra.mxu0 0.0
    %119 = vmatprep.subr.mxu0 0.0
    %120 = vmatpush1.xpose.msra.mxu0 0.0
    %121 = vmatprep.subr.mxu0 0.0
    %122 = vmatpush1.xpose.msra.mxu0 0.0
    %123 = vmatprep.subr.mxu0 0.0
    %124 = vmatpush1.xpose.msra.mxu0 0.0
    %125 = vmatprep.subr.mxu0 0.0
    %126 = vmatpush1.xpose.msra.mxu0 0.0
    %127 = vmatprep.subr.mxu0 0.0
    %128 = vmatpush1.xpose.msra.mxu0 0.0
    %129 = vmatprep.subr.mxu0 0.0
    %130 = vmatpush1.xpose.msra.mxu0 0.0
    %131 = vmatprep.subr.mxu0 0.0
    %132 = vmatpush1.xpose.msra.mxu0 0.0
    %133 = vmatprep.subr.mxu0 0.0
    %134 = vmatpush1.xpose.msra.mxu0 0.0
    %135 = vmatprep.subr.mxu0 0.0
    %136 = vmatpush1.xpose.msra.mxu0 0.0
    %137 = vmatprep.subr.mxu0 0.0
    %138 = vmatpush1.xpose.msra.mxu0 0.0
    %139 = vmatprep.subr.mxu0 0.0
    %140 = vmatpush1.xpose.msra.mxu0 0.0
    %141 = vmatprep.subr.mxu0 0.0
    %142 = vmatpush1.xpose.msra.mxu0 0.0
    %143 = vmatprep.subr.mxu0 0.0
    %144 = vmatpush1.xpose.msra.mxu0 %v111
    %145 = vmatprep.subr.mxu0 0.0
    %146 = vmatpush2.xpose.msra.mxu0 0.0
    %147 = vmatprep.subr.mxu0 0.0
    %148 = vmatpush2.xpose.msra.mxu0 0.0
    %149 = vmatprep.subr.mxu0 0.0
    %150 = vmatpush2.xpose.msra.mxu0 0.0
    %151 = vmatprep.subr.mxu0 0.0
    %152 = vmatpush2.xpose.msra.mxu0 0.0
    %153 = vmatprep.subr.mxu0 0.0
    %154 = vmatpush2.xpose.msra.mxu0 0.0
    %155 = vmatprep.subr.mxu0 0.0
    %156 = vmatpush2.xpose.msra.mxu0 0.0
    %157 = vmatprep.subr.mxu0 0.0
    %158 = vmatpush2.xpose.msra.mxu0 0.0
    %159 = vmatprep.subr.mxu0 0.0
    %160 = vmatpush2.xpose.msra.mxu0 0.0
    %161 = vmatprep.subr.mxu0 0.0
    %162 = vmatpush2.xpose.msra.mxu0 0.0
    %163 = vmatprep.subr.mxu0 0.0
    %164 = vmatpush2.xpose.msra.mxu0 0.0
    %165 = vmatprep.subr.mxu0 0.0
    %166 = vmatpush2.xpose.msra.mxu0 0.0
    %167 = vmatprep.subr.mxu0 0.0
    %168 = vmatpush2.xpose.msra.mxu0 0.0
    %169 = vmatprep.subr.mxu0 0.0
    %170 = vmatpush2.xpose.msra.mxu0 0.0
    %171 = vmatprep.subr.mxu0 0.0
    %172 = vmatpush2.xpose.msra.mxu0 0.0
    %173 = vmatprep.subr.mxu0 0.0
    %174 = vmatpush2.xpose.msra.mxu0 0.0
    %175 = vmatprep.subr.mxu0 0.0
    %176 = vmatpush2.xpose.msra.mxu0 0.0
    %177 = vmatprep.mubr.f32.mxu0 0.0
    %178 = vmatmul.mubr.f32.gmra.mxu0 %v109
    %v179 = vpop.f32.mrf.mxu0
    %v180 = vadd.f32 0.0, %v179
    %v181 = vpop.f32.mrf.mxu0
    %182 = vdwg.mxu0
    %184 = vrot.lane.b32.xlu0 %v102, 96
    %v185 = vpop.permute.xlu0 %184
    %v186 = vsel %vm108, %v102, 0
    %v188 = vsel %vm108, %v185, 0
    %190 = vmatprep.subr.mxu0 0.0
    %191 = vmatpush1.xpose.msra.mxu0 0.0
    %192 = vmatprep.subr.mxu0 0.0
    %193 = vmatpush1.xpose.msra.mxu0 0.0
    %194 = vmatprep.subr.mxu0 0.0
    %195 = vmatpush1.xpose.msra.mxu0 0.0
    %196 = vmatprep.subr.mxu0 0.0
    %197 = vmatpush1.xpose.msra.mxu0 0.0
    %198 = vmatprep.subr.mxu0 0.0
    %199 = vmatpush1.xpose.msra.mxu0 0.0
    %200 = vmatprep.subr.mxu0 0.0
    %201 = vmatpush1.xpose.msra.mxu0 0.0
    %202 = vmatprep.subr.mxu0 0.0
    %203 = vmatpush1.xpose.msra.mxu0 0.0
    %204 = vmatprep.subr.mxu0 0.0
    %205 = vmatpush1.xpose.msra.mxu0 0.0
    %206 = vmatprep.subr.mxu0 0.0
    %207 = vmatpush1.xpose.msra.mxu0 0.0
    %208 = vmatprep.subr.mxu0 0.0
    %209 = vmatpush1.xpose.msra.mxu0 0.0
    %210 = vmatprep.subr.mxu0 0.0
    %211 = vmatpush1.xpose.msra.mxu0 0.0
    %212 = vmatprep.subr.mxu0 0.0
    %213 = vmatpush1.xpose.msra.mxu0 0.0
    %214 = vmatprep.subr.mxu0 0.0
    %215 = vmatpush1.xpose.msra.mxu0 0.0
    %216 = vmatprep.subr.mxu0 0.0
    %217 = vmatpush1.xpose.msra.mxu0 0.0
    %218 = vmatprep.subr.mxu0 0.0
    %219 = vmatpush1.xpose.msra.mxu0 0.0
    %220 = vmatprep.subr.mxu0 0.0
    %221 = vmatpush1.xpose.msra.mxu0 %v188
    %222 = vmatprep.subr.mxu0 0.0
    %223 = vmatpush2.xpose.msra.mxu0 0.0
    %224 = vmatprep.subr.mxu0 0.0
    %225 = vmatpush2.xpose.msra.mxu0 0.0
    %226 = vmatprep.subr.mxu0 0.0
    %227 = vmatpush2.xpose.msra.mxu0 0.0
    %228 = vmatprep.subr.mxu0 0.0
    %229 = vmatpush2.xpose.msra.mxu0 0.0
    %230 = vmatprep.subr.mxu0 0.0
    %231 = vmatpush2.xpose.msra.mxu0 0.0
    %232 = vmatprep.subr.mxu0 0.0
    %233 = vmatpush2.xpose.msra.mxu0 0.0
    %234 = vmatprep.subr.mxu0 0.0
    %235 = vmatpush2.xpose.msra.mxu0 0.0
    %236 = vmatprep.subr.mxu0 0.0
    %237 = vmatpush2.xpose.msra.mxu0 0.0
    %238 = vmatprep.subr.mxu0 0.0
    %239 = vmatpush2.xpose.msra.mxu0 0.0
    %240 = vmatprep.subr.mxu0 0.0
    %241 = vmatpush2.xpose.msra.mxu0 0.0
    %242 = vmatprep.subr.mxu0 0.0
    %243 = vmatpush2.xpose.msra.mxu0 0.0
    %244 = vmatprep.subr.mxu0 0.0
    %245 = vmatpush2.xpose.msra.mxu0 0.0
    %246 = vmatprep.subr.mxu0 0.0
    %247 = vmatpush2.xpose.msra.mxu0 0.0
    %248 = vmatprep.subr.mxu0 0.0
    %249 = vmatpush2.xpose.msra.mxu0 0.0
    %250 = vmatprep.subr.mxu0 0.0
    %251 = vmatpush2.xpose.msra.mxu0 0.0
    %252 = vmatprep.subr.mxu0 0.0
    %253 = vmatpush2.xpose.msra.mxu0 0.0
    %254 = vmatprep.mubr.f32.mxu0 0.0
    %255 = vmatmul.mubr.f32.gmra.mxu0 %v186
    %v256 = vpop.f32.mrf.mxu0
    %v257 = vadd.f32 0.0, %v256
    %v258 = vpop.f32.mrf.mxu0
    %259 = vdwg.mxu0
    %v260 = vsel %vm108, %v180, -inf
    %261 = vmax.xlane.f32.xlu0 %v260
    %v262 = vpop.xlane.xlu0 %261
    %v263 = vsel %vm108, %v257, -inf
    %264 = vmax.xlane.f32.xlu0 %v263
    %v265 = vpop.xlane.xlu0 %264
    %v266 = vsub.f32 %v180, %v262
    %v267 = vsub.f32 %v257, %v265
    %v268 = vmul.f32 %v266, 1.442695
    %v269 = vpow.pop %v268
    %v270 = vmul.f32 %v267, 1.442695
    %v271 = vpow.pop %v270
    %v272 = vsel %vm108, %v269, 0.0
    %273 = vadd.xlane.f32.xlu0 %v272
    %v274 = vpop.xlane.xlu0 %273
    %v275 = vsel %vm108, %v271, 0.0
    %276 = vadd.xlane.f32.xlu0 %v275
    %v277 = vpop.xlane.xlu0 %276
    %v278 = vrcp.pop %v274
    %v279 = vrcp.pop %v277
    %v280 = vmul.f32 %v269, %v278
    %v281 = vmul.f32 %v271, %v279
    %282 = vrot.lane.b32.xlu0 %v99, 64
    %v283 = vpop.permute.xlu0 %282
    %v286 = vsel %vm108, %v280, 0
    %288 = vmatprep.subr.mxu0 0.0
    %289 = vmatpush1.msra.mxu0 0.0
    %290 = vmatprep.subr.mxu0 0.0
    %291 = vmatpush1.msra.mxu0 0.0
    %292 = vmatprep.subr.mxu0 0.0
    %293 = vmatpush1.msra.mxu0 0.0
    %294 = vmatprep.subr.mxu0 0.0
    %295 = vmatpush1.msra.mxu0 0.0
    %296 = vmatprep.subr.mxu0 0.0
    %297 = vmatpush1.msra.mxu0 0.0
    %298 = vmatprep.subr.mxu0 0.0
    %299 = vmatpush1.msra.mxu0 0.0
    %300 = vmatprep.subr.mxu0 0.0
    %301 = vmatpush1.msra.mxu0 0.0
    %302 = vmatprep.subr.mxu0 0.0
    %303 = vmatpush1.msra.mxu0 0.0
    %304 = vmatprep.subr.mxu0 0.0
    %305 = vmatpush1.msra.mxu0 0.0
    %306 = vmatprep.subr.mxu0 0.0
    %307 = vmatpush1.msra.mxu0 0.0
    %308 = vmatprep.subr.mxu0 0.0
    %309 = vmatpush1.msra.mxu0 0.0
    %310 = vmatprep.subr.mxu0 0.0
    %311 = vmatpush1.msra.mxu0 0.0
    %312 = vmatprep.subr.mxu0 0.0
    %313 = vmatpush1.msra.mxu0 0.0
    %314 = vmatprep.subr.mxu0 0.0
    %315 = vmatpush1.msra.mxu0 0.0
    %316 = vmatprep.subr.mxu0 0.0
    %317 = vmatpush1.msra.mxu0 0.0
    %318 = vmatprep.subr.mxu0 0.0
    %319 = vmatpush1.msra.mxu0 %v283
    %320 = vmatprep.subr.mxu0 0.0
    %321 = vmatpush2.msra.mxu0 0.0
    %322 = vmatprep.subr.mxu0 0.0
    %323 = vmatpush2.msra.mxu0 0.0
    %324 = vmatprep.subr.mxu0 0.0
    %325 = vmatpush2.msra.mxu0 0.0
    %326 = vmatprep.subr.mxu0 0.0
    %327 = vmatpush2.msra.mxu0 0.0
    %328 = vmatprep.subr.mxu0 0.0
    %329 = vmatpush2.msra.mxu0 0.0
    %330 = vmatprep.subr.mxu0 0.0
    %331 = vmatpush2.msra.mxu0 0.0
    %332 = vmatprep.subr.mxu0 0.0
    %333 = vmatpush2.msra.mxu0 0.0
    %334 = vmatprep.subr.mxu0 0.0
    %335 = vmatpush2.msra.mxu0 0.0
    %336 = vmatprep.subr.mxu0 0.0
    %337 = vmatpush2.msra.mxu0 0.0
    %338 = vmatprep.subr.mxu0 0.0
    %339 = vmatpush2.msra.mxu0 0.0
    %340 = vmatprep.subr.mxu0 0.0
    %341 = vmatpush2.msra.mxu0 0.0
    %342 = vmatprep.subr.mxu0 0.0
    %343 = vmatpush2.msra.mxu0 0.0
    %344 = vmatprep.subr.mxu0 0.0
    %345 = vmatpush2.msra.mxu0 0.0
    %346 = vmatprep.subr.mxu0 0.0
    %347 = vmatpush2.msra.mxu0 0.0
    %348 = vmatprep.subr.mxu0 0.0
    %349 = vmatpush2.msra.mxu0 0.0
    %350 = vmatprep.subr.mxu0 0.0
    %351 = vmatpush2.msra.mxu0 0.0
    %352 = vmatprep.mubr.f32.mxu0 0.0
    %353 = vmatmul.mubr.f32.gmra.mxu0 %v286
    %v354 = vpop.f32.mrf.mxu0
    %v355 = vadd.f32 0.0, %v354
    %v356 = vpop.f32.mrf.mxu0
    %357 = vdwg.mxu0
    %358 = vrot.lane.b32.xlu0 %v102, 64
    %v359 = vpop.permute.xlu0 %358
    %v362 = vsel %vm108, %v281, 0
    %364 = vmatprep.subr.mxu0 0.0
    %365 = vmatpush1.msra.mxu0 0.0
    %366 = vmatprep.subr.mxu0 0.0
    %367 = vmatpush1.msra.mxu0 0.0
    %368 = vmatprep.subr.mxu0 0.0
    %369 = vmatpush1.msra.mxu0 0.0
    %370 = vmatprep.subr.mxu0 0.0
    %371 = vmatpush1.msra.mxu0 0.0
    %372 = vmatprep.subr.mxu0 0.0
    %373 = vmatpush1.msra.mxu0 0.0
    %374 = vmatprep.subr.mxu0 0.0
    %375 = vmatpush1.msra.mxu0 0.0
    %376 = vmatprep.subr.mxu0 0.0
    %377 = vmatpush1.msra.mxu0 0.0
    %378 = vmatprep.subr.mxu0 0.0
    %379 = vmatpush1.msra.mxu0 0.0
    %380 = vmatprep.subr.mxu0 0.0
    %381 = vmatpush1.msra.mxu0 0.0
    %382 = vmatprep.subr.mxu0 0.0
    %383 = vmatpush1.msra.mxu0 0.0
    %384 = vmatprep.subr.mxu0 0.0
    %385 = vmatpush1.msra.mxu0 0.0
    %386 = vmatprep.subr.mxu0 0.0
    %387 = vmatpush1.msra.mxu0 0.0
    %388 = vmatprep.subr.mxu0 0.0
    %389 = vmatpush1.msra.mxu0 0.0
    %390 = vmatprep.subr.mxu0 0.0
    %391 = vmatpush1.msra.mxu0 0.0
    %392 = vmatprep.subr.mxu0 0.0
    %393 = vmatpush1.msra.mxu0 0.0
    %394 = vmatprep.subr.mxu0 0.0
    %395 = vmatpush1.msra.mxu0 %v359
    %396 = vmatprep.subr.mxu0 0.0
    %397 = vmatpush2.msra.mxu0 0.0
    %398 = vmatprep.subr.mxu0 0.0
    %399 = vmatpush2.msra.mxu0 0.0
    %400 = vmatprep.subr.mxu0 0.0
    %401 = vmatpush2.msra.mxu0 0.0
    %402 = vmatprep.subr.mxu0 0.0
    %403 = vmatpush2.msra.mxu0 0.0
    %404 = vmatprep.subr.mxu0 0.0
    %405 = vmatpush2.msra.mxu0 0.0
    %406 = vmatprep.subr.mxu0 0.0
    %407 = vmatpush2.msra.mxu0 0.0
    %408 = vmatprep.subr.mxu0 0.0
    %409 = vmatpush2.msra.mxu0 0.0
    %410 = vmatprep.subr.mxu0 0.0
    %411 = vmatpush2.msra.mxu0 0.0
    %412 = vmatprep.subr.mxu0 0.0
    %413 = vmatpush2.msra.mxu0 0.0
    %414 = vmatprep.subr.mxu0 0.0
    %415 = vmatpush2.msra.mxu0 0.0
    %416 = vmatprep.subr.mxu0 0.0
    %417 = vmatpush2.msra.mxu0 0.0
    %418 = vmatprep.subr.mxu0 0.0
    %419 = vmatpush2.msra.mxu0 0.0
    %420 = vmatprep.subr.mxu0 0.0
    %421 = vmatpush2.msra.mxu0 0.0
    %422 = vmatprep.subr.mxu0 0.0
    %423 = vmatpush2.msra.mxu0 0.0
    %424 = vmatprep.subr.mxu0 0.0
    %425 = vmatpush2.msra.mxu0 0.0
    %426 = vmatprep.subr.mxu0 0.0
    %427 = vmatpush2.msra.mxu0 0.0
    %428 = vmatprep.mubr.f32.mxu0 0.0
    %429 = vmatmul.mubr.f32.gmra.mxu0 %v362
    %v430 = vpop.f32.mrf.mxu0
    %v431 = vadd.f32 0.0, %v430
    %v432 = vpop.f32.mrf.mxu0
    %433 = vdwg.mxu0
    %434 = vrot.lane.b32.xlu0 %v99, 120
    %v435 = vpop.permute.xlu0 %434
    %436 = vrot.lane.b32.xlu0 %v99, 88
    %v437 = vpop.permute.xlu0 %436
    %v438 = vsel %vm108, %v435, 0
    %v440 = vsel %vm108, %v437, 0
    %442 = vmatprep.subr.mxu0 0.0
    %443 = vmatpush1.xpose.msra.mxu0 0.0
    %444 = vmatprep.subr.mxu0 0.0
    %445 = vmatpush1.xpose.msra.mxu0 0.0
    %446 = vmatprep.subr.mxu0 0.0
    %447 = vmatpush1.xpose.msra.mxu0 0.0
    %448 = vmatprep.subr.mxu0 0.0
    %449 = vmatpush1.xpose.msra.mxu0 0.0
    %450 = vmatprep.subr.mxu0 0.0
    %451 = vmatpush1.xpose.msra.mxu0 0.0
    %452 = vmatprep.subr.mxu0 0.0
    %453 = vmatpush1.xpose.msra.mxu0 0.0
    %454 = vmatprep.subr.mxu0 0.0
    %455 = vmatpush1.xpose.msra.mxu0 0.0
    %456 = vmatprep.subr.mxu0 0.0
    %457 = vmatpush1.xpose.msra.mxu0 0.0
    %458 = vmatprep.subr.mxu0 0.0
    %459 = vmatpush1.xpose.msra.mxu0 0.0
    %460 = vmatprep.subr.mxu0 0.0
    %461 = vmatpush1.xpose.msra.mxu0 0.0
    %462 = vmatprep.subr.mxu0 0.0
    %463 = vmatpush1.xpose.msra.mxu0 0.0
    %464 = vmatprep.subr.mxu0 0.0
    %465 = vmatpush1.xpose.msra.mxu0 0.0
    %466 = vmatprep.subr.mxu0 0.0
    %467 = vmatpush1.xpose.msra.mxu0 0.0
    %468 = vmatprep.subr.mxu0 0.0
    %469 = vmatpush1.xpose.msra.mxu0 0.0
    %470 = vmatprep.subr.mxu0 0.0
    %471 = vmatpush1.xpose.msra.mxu0 0.0
    %472 = vmatprep.subr.mxu0 0.0
    %473 = vmatpush1.xpose.msra.mxu0 %v440
    %474 = vmatprep.subr.mxu0 0.0
    %475 = vmatpush2.xpose.msra.mxu0 0.0
    %476 = vmatprep.subr.mxu0 0.0
    %477 = vmatpush2.xpose.msra.mxu0 0.0
    %478 = vmatprep.subr.mxu0 0.0
    %479 = vmatpush2.xpose.msra.mxu0 0.0
    %480 = vmatprep.subr.mxu0 0.0
    %481 = vmatpush2.xpose.msra.mxu0 0.0
    %482 = vmatprep.subr.mxu0 0.0
    %483 = vmatpush2.xpose.msra.mxu0 0.0
    %484 = vmatprep.subr.mxu0 0.0
    %485 = vmatpush2.xpose.msra.mxu0 0.0
    %486 = vmatprep.subr.mxu0 0.0
    %487 = vmatpush2.xpose.msra.mxu0 0.0
    %488 = vmatprep.subr.mxu0 0.0
    %489 = vmatpush2.xpose.msra.mxu0 0.0
    %490 = vmatprep.subr.mxu0 0.0
    %491 = vmatpush2.xpose.msra.mxu0 0.0
    %492 = vmatprep.subr.mxu0 0.0
    %493 = vmatpush2.xpose.msra.mxu0 0.0
    %494 = vmatprep.subr.mxu0 0.0
    %495 = vmatpush2.xpose.msra.mxu0 0.0
    %496 = vmatprep.subr.mxu0 0.0
    %497 = vmatpush2.xpose.msra.mxu0 0.0
    %498 = vmatprep.subr.mxu0 0.0
    %499 = vmatpush2.xpose.msra.mxu0 0.0
    %500 = vmatprep.subr.mxu0 0.0
    %501 = vmatpush2.xpose.msra.mxu0 0.0
    %502 = vmatprep.subr.mxu0 0.0
    %503 = vmatpush2.xpose.msra.mxu0 0.0
    %504 = vmatprep.subr.mxu0 0.0
    %505 = vmatpush2.xpose.msra.mxu0 0.0
    %506 = vmatprep.mubr.f32.mxu0 0.0
    %507 = vmatmul.mubr.f32.gmra.mxu0 %v438
    %v508 = vpop.f32.mrf.mxu0
    %v509 = vadd.f32 0.0, %v508
    %v510 = vpop.f32.mrf.mxu0
    %511 = vdwg.mxu0
    %512 = vrot.lane.b32.xlu0 %v102, 120
    %v513 = vpop.permute.xlu0 %512
    %514 = vrot.lane.b32.xlu0 %v102, 88
    %v515 = vpop.permute.xlu0 %514
    %v516 = vsel %vm108, %v513, 0
    %v518 = vsel %vm108, %v515, 0
    %520 = vmatprep.subr.mxu0 0.0
    %521 = vmatpush1.xpose.msra.mxu0 0.0
    %522 = vmatprep.subr.mxu0 0.0
    %523 = vmatpush1.xpose.msra.mxu0 0.0
    %524 = vmatprep.subr.mxu0 0.0
    %525 = vmatpush1.xpose.msra.mxu0 0.0
    %526 = vmatprep.subr.mxu0 0.0
    %527 = vmatpush1.xpose.msra.mxu0 0.0
    %528 = vmatprep.subr.mxu0 0.0
    %529 = vmatpush1.xpose.msra.mxu0 0.0
    %530 = vmatprep.subr.mxu0 0.0
    %531 = vmatpush1.xpose.msra.mxu0 0.0
    %532 = vmatprep.subr.mxu0 0.0
    %533 = vmatpush1.xpose.msra.mxu0 0.0
    %534 = vmatprep.subr.mxu0 0.0
    %535 = vmatpush1.xpose.msra.mxu0 0.0
    %536 = vmatprep.subr.mxu0 0.0
    %537 = vmatpush1.xpose.msra.mxu0 0.0
    %538 = vmatprep.subr.mxu0 0.0
    %539 = vmatpush1.xpose.msra.mxu0 0.0
    %540 = vmatprep.subr.mxu0 0.0
    %541 = vmatpush1.xpose.msra.mxu0 0.0
    %542 = vmatprep.subr.mxu0 0.0
    %543 = vmatpush1.xpose.msra.mxu0 0.0
    %544 = vmatprep.subr.mxu0 0.0
    %545 = vmatpush1.xpose.msra.mxu0 0.0
    %546 = vmatprep.subr.mxu0 0.0
    %547 = vmatpush1.xpose.msra.mxu0 0.0
    %548 = vmatprep.subr.mxu0 0.0
    %549 = vmatpush1.xpose.msra.mxu0 0.0
    %550 = vmatprep.subr.mxu0 0.0
    %551 = vmatpush1.xpose.msra.mxu0 %v518
    %552 = vmatprep.subr.mxu0 0.0
    %553 = vmatpush2.xpose.msra.mxu0 0.0
    %554 = vmatprep.subr.mxu0 0.0
    %555 = vmatpush2.xpose.msra.mxu0 0.0
    %556 = vmatprep.subr.mxu0 0.0
    %557 = vmatpush2.xpose.msra.mxu0 0.0
    %558 = vmatprep.subr.mxu0 0.0
    %559 = vmatpush2.xpose.msra.mxu0 0.0
    %560 = vmatprep.subr.mxu0 0.0
    %561 = vmatpush2.xpose.msra.mxu0 0.0
    %562 = vmatprep.subr.mxu0 0.0
    %563 = vmatpush2.xpose.msra.mxu0 0.0
    %564 = vmatprep.subr.mxu0 0.0
    %565 = vmatpush2.xpose.msra.mxu0 0.0
    %566 = vmatprep.subr.mxu0 0.0
    %567 = vmatpush2.xpose.msra.mxu0 0.0
    %568 = vmatprep.subr.mxu0 0.0
    %569 = vmatpush2.xpose.msra.mxu0 0.0
    %570 = vmatprep.subr.mxu0 0.0
    %571 = vmatpush2.xpose.msra.mxu0 0.0
    %572 = vmatprep.subr.mxu0 0.0
    %573 = vmatpush2.xpose.msra.mxu0 0.0
    %574 = vmatprep.subr.mxu0 0.0
    %575 = vmatpush2.xpose.msra.mxu0 0.0
    %576 = vmatprep.subr.mxu0 0.0
    %577 = vmatpush2.xpose.msra.mxu0 0.0
    %578 = vmatprep.subr.mxu0 0.0
    %579 = vmatpush2.xpose.msra.mxu0 0.0
    %580 = vmatprep.subr.mxu0 0.0
    %581 = vmatpush2.xpose.msra.mxu0 0.0
    %582 = vmatprep.subr.mxu0 0.0
    %583 = vmatpush2.xpose.msra.mxu0 0.0
    %584 = vmatprep.mubr.f32.mxu0 0.0
    %585 = vmatmul.mubr.f32.gmra.mxu0 %v516
    %v586 = vpop.f32.mrf.mxu0
    %v587 = vadd.f32 0.0, %v586
    %v588 = vpop.f32.mrf.mxu0
    %589 = vdwg.mxu0
    %v590 = vsel %vm108, %v509, -inf
    %591 = vmax.xlane.f32.xlu0 %v590
    %v592 = vpop.xlane.xlu0 %591
    %v593 = vsel %vm108, %v587, -inf
    %594 = vmax.xlane.f32.xlu0 %v593
    %v595 = vpop.xlane.xlu0 %594
    %v596 = vsub.f32 %v509, %v592
    %v597 = vsub.f32 %v587, %v595
    %v598 = vmul.f32 %v596, 1.442695
    %v599 = vpow.pop %v598
    %v600 = vmul.f32 %v597, 1.442695
    %v601 = vpow.pop %v600
    %v602 = vsel %vm108, %v599, 0.0
    %603 = vadd.xlane.f32.xlu0 %v602
    %v604 = vpop.xlane.xlu0 %603
    %v605 = vsel %vm108, %v601, 0.0
    %606 = vadd.xlane.f32.xlu0 %v605
    %v607 = vpop.xlane.xlu0 %606
    %v608 = vrcp.pop %v604
    %v609 = vrcp.pop %v607
    %v610 = vmul.f32 %v599, %v608
    %v611 = vmul.f32 %v601, %v609
    %612 = vrot.lane.b32.xlu0 %v99, 56
    %v613 = vpop.permute.xlu0 %612
    %v616 = vsel %vm108, %v610, 0
    %618 = vmatprep.subr.mxu0 0.0
    %619 = vmatpush1.msra.mxu0 0.0
    %620 = vmatprep.subr.mxu0 0.0
    %621 = vmatpush1.msra.mxu0 0.0
    %622 = vmatprep.subr.mxu0 0.0
    %623 = vmatpush1.msra.mxu0 0.0
    %624 = vmatprep.subr.mxu0 0.0
    %625 = vmatpush1.msra.mxu0 0.0
    %626 = vmatprep.subr.mxu0 0.0
    %627 = vmatpush1.msra.mxu0 0.0
    %628 = vmatprep.subr.mxu0 0.0
    %629 = vmatpush1.msra.mxu0 0.0
    %630 = vmatprep.subr.mxu0 0.0
    %631 = vmatpush1.msra.mxu0 0.0
    %632 = vmatprep.subr.mxu0 0.0
    %633 = vmatpush1.msra.mxu0 0.0
    %634 = vmatprep.subr.mxu0 0.0
    %635 = vmatpush1.msra.mxu0 0.0
    %636 = vmatprep.subr.mxu0 0.0
    %637 = vmatpush1.msra.mxu0 0.0
    %638 = vmatprep.subr.mxu0 0.0
    %639 = vmatpush1.msra.mxu0 0.0
    %640 = vmatprep.subr.mxu0 0.0
    %641 = vmatpush1.msra.mxu0 0.0
    %642 = vmatprep.subr.mxu0 0.0
    %643 = vmatpush1.msra.mxu0 0.0
    %644 = vmatprep.subr.mxu0 0.0
    %645 = vmatpush1.msra.mxu0 0.0
    %646 = vmatprep.subr.mxu0 0.0
    %647 = vmatpush1.msra.mxu0 0.0
    %648 = vmatprep.subr.mxu0 0.0
    %649 = vmatpush1.msra.mxu0 %v613
    %650 = vmatprep.subr.mxu0 0.0
    %651 = vmatpush2.msra.mxu0 0.0
    %652 = vmatprep.subr.mxu0 0.0
    %653 = vmatpush2.msra.mxu0 0.0
    %654 = vmatprep.subr.mxu0 0.0
    %655 = vmatpush2.msra.mxu0 0.0
    %656 = vmatprep.subr.mxu0 0.0
    %657 = vmatpush2.msra.mxu0 0.0
    %658 = vmatprep.subr.mxu0 0.0
    %659 = vmatpush2.msra.mxu0 0.0
    %660 = vmatprep.subr.mxu0 0.0
    %661 = vmatpush2.msra.mxu0 0.0
    %662 = vmatprep.subr.mxu0 0.0
    %663 = vmatpush2.msra.mxu0 0.0
    %664 = vmatprep.subr.mxu0 0.0
    %665 = vmatpush2.msra.mxu0 0.0
    %666 = vmatprep.subr.mxu0 0.0
    %667 = vmatpush2.msra.mxu0 0.0
    %668 = vmatprep.subr.mxu0 0.0
    %669 = vmatpush2.msra.mxu0 0.0
    %670 = vmatprep.subr.mxu0 0.0
    %671 = vmatpush2.msra.mxu0 0.0
    %672 = vmatprep.subr.mxu0 0.0
    %673 = vmatpush2.msra.mxu0 0.0
    %674 = vmatprep.subr.mxu0 0.0
    %675 = vmatpush2.msra.mxu0 0.0
    %676 = vmatprep.subr.mxu0 0.0
    %677 = vmatpush2.msra.mxu0 0.0
    %678 = vmatprep.subr.mxu0 0.0
    %679 = vmatpush2.msra.mxu0 0.0
    %680 = vmatprep.subr.mxu0 0.0
    %681 = vmatpush2.msra.mxu0 0.0
    %682 = vmatprep.mubr.f32.mxu0 0.0
    %683 = vmatmul.mubr.f32.gmra.mxu0 %v616
    %v684 = vpop.f32.mrf.mxu0
    %v685 = vadd.f32 0.0, %v684
    %v686 = vpop.f32.mrf.mxu0
    %687 = vdwg.mxu0
    %688 = vrot.lane.b32.xlu0 %v102, 56
    %v689 = vpop.permute.xlu0 %688
    %v692 = vsel %vm108, %v611, 0
    %694 = vmatprep.subr.mxu0 0.0
    %695 = vmatpush1.msra.mxu0 0.0
    %696 = vmatprep.subr.mxu0 0.0
    %697 = vmatpush1.msra.mxu0 0.0
    %698 = vmatprep.subr.mxu0 0.0
    %699 = vmatpush1.msra.mxu0 0.0
    %700 = vmatprep.subr.mxu0 0.0
    %701 = vmatpush1.msra.mxu0 0.0
    %702 = vmatprep.subr.mxu0 0.0
    %703 = vmatpush1.msra.mxu0 0.0
    %704 = vmatprep.subr.mxu0 0.0
    %705 = vmatpush1.msra.mxu0 0.0
    %706 = vmatprep.subr.mxu0 0.0
    %707 = vmatpush1.msra.mxu0 0.0
    %708 = vmatprep.subr.mxu0 0.0
    %709 = vmatpush1.msra.mxu0 0.0
    %710 = vmatprep.subr.mxu0 0.0
    %711 = vmatpush1.msra.mxu0 0.0
    %712 = vmatprep.subr.mxu0 0.0
    %713 = vmatpush1.msra.mxu0 0.0
    %714 = vmatprep.subr.mxu0 0.0
    %715 = vmatpush1.msra.mxu0 0.0
    %716 = vmatprep.subr.mxu0 0.0
    %717 = vmatpush1.msra.mxu0 0.0
    %718 = vmatprep.subr.mxu0 0.0
    %719 = vmatpush1.msra.mxu0 0.0
    %720 = vmatprep.subr.mxu0 0.0
    %721 = vmatpush1.msra.mxu0 0.0
    %722 = vmatprep.subr.mxu0 0.0
    %723 = vmatpush1.msra.mxu0 0.0
    %724 = vmatprep.subr.mxu0 0.0
    %725 = vmatpush1.msra.mxu0 %v689
    %726 = vmatprep.subr.mxu0 0.0
    %727 = vmatpush2.msra.mxu0 0.0
    %728 = vmatprep.subr.mxu0 0.0
    %729 = vmatpush2.msra.mxu0 0.0
    %730 = vmatprep.subr.mxu0 0.0
    %731 = vmatpush2.msra.mxu0 0.0
    %732 = vmatprep.subr.mxu0 0.0
    %733 = vmatpush2.msra.mxu0 0.0
    %734 = vmatprep.subr.mxu0 0.0
    %735 = vmatpush2.msra.mxu0 0.0
    %736 = vmatprep.subr.mxu0 0.0
    %737 = vmatpush2.msra.mxu0 0.0
    %738 = vmatprep.subr.mxu0 0.0
    %739 = vmatpush2.msra.mxu0 0.0
    %740 = vmatprep.subr.mxu0 0.0
    %741 = vmatpush2.msra.mxu0 0.0
    %742 = vmatprep.subr.mxu0 0.0
    %743 = vmatpush2.msra.mxu0 0.0
    %744 = vmatprep.subr.mxu0 0.0
    %745 = vmatpush2.msra.mxu0 0.0
    %746 = vmatprep.subr.mxu0 0.0
    %747 = vmatpush2.msra.mxu0 0.0
    %748 = vmatprep.subr.mxu0 0.0
    %749 = vmatpush2.msra.mxu0 0.0
    %750 = vmatprep.subr.mxu0 0.0
    %751 = vmatpush2.msra.mxu0 0.0
    %752 = vmatprep.subr.mxu0 0.0
    %753 = vmatpush2.msra.mxu0 0.0
    %754 = vmatprep.subr.mxu0 0.0
    %755 = vmatpush2.msra.mxu0 0.0
    %756 = vmatprep.subr.mxu0 0.0
    %757 = vmatpush2.msra.mxu0 0.0
    %758 = vmatprep.mubr.f32.mxu0 0.0
    %759 = vmatmul.mubr.f32.gmra.mxu0 %v692
    %v760 = vpop.f32.mrf.mxu0
    %v761 = vadd.f32 0.0, %v760
    %v762 = vpop.f32.mrf.mxu0
    %763 = vdwg.mxu0
    %764 = vrot.lane.b32.xlu0 %v99, 112
    %v765 = vpop.permute.xlu0 %764
    %766 = vrot.lane.b32.xlu0 %v99, 80
    %v767 = vpop.permute.xlu0 %766
    %v768 = vsel %vm108, %v765, 0
    %v770 = vsel %vm108, %v767, 0
    %772 = vmatprep.subr.mxu0 0.0
    %773 = vmatpush1.xpose.msra.mxu0 0.0
    %774 = vmatprep.subr.mxu0 0.0
    %775 = vmatpush1.xpose.msra.mxu0 0.0
    %776 = vmatprep.subr.mxu0 0.0
    %777 = vmatpush1.xpose.msra.mxu0 0.0
    %778 = vmatprep.subr.mxu0 0.0
    %779 = vmatpush1.xpose.msra.mxu0 0.0
    %780 = vmatprep.subr.mxu0 0.0
    %781 = vmatpush1.xpose.msra.mxu0 0.0
    %782 = vmatprep.subr.mxu0 0.0
    %783 = vmatpush1.xpose.msra.mxu0 0.0
    %784 = vmatprep.subr.mxu0 0.0
    %785 = vmatpush1.xpose.msra.mxu0 0.0
    %786 = vmatprep.subr.mxu0 0.0
    %787 = vmatpush1.xpose.msra.mxu0 0.0
    %788 = vmatprep.subr.mxu0 0.0
    %789 = vmatpush1.xpose.msra.mxu0 0.0
    %790 = vmatprep.subr.mxu0 0.0
    %791 = vmatpush1.xpose.msra.mxu0 0.0
    %792 = vmatprep.subr.mxu0 0.0
    %793 = vmatpush1.xpose.msra.mxu0 0.0
    %794 = vmatprep.subr.mxu0 0.0
    %795 = vmatpush1.xpose.msra.mxu0 0.0
    %796 = vmatprep.subr.mxu0 0.0
    %797 = vmatpush1.xpose.msra.mxu0 0.0
    %798 = vmatprep.subr.mxu0 0.0
    %799 = vmatpush1.xpose.msra.mxu0 0.0
    %800 = vmatprep.subr.mxu0 0.0
    %801 = vmatpush1.xpose.msra.mxu0 0.0
    %802 = vmatprep.subr.mxu0 0.0
    %803 = vmatpush1.xpose.msra.mxu0 %v770
    %804 = vmatprep.subr.mxu0 0.0
    %805 = vmatpush2.xpose.msra.mxu0 0.0
    %806 = vmatprep.subr.mxu0 0.0
    %807 = vmatpush2.xpose.msra.mxu0 0.0
    %808 = vmatprep.subr.mxu0 0.0
    %809 = vmatpush2.xpose.msra.mxu0 0.0
    %810 = vmatprep.subr.mxu0 0.0
    %811 = vmatpush2.xpose.msra.mxu0 0.0
    %812 = vmatprep.subr.mxu0 0.0
    %813 = vmatpush2.xpose.msra.mxu0 0.0
    %814 = vmatprep.subr.mxu0 0.0
    %815 = vmatpush2.xpose.msra.mxu0 0.0
    %816 = vmatprep.subr.mxu0 0.0
    %817 = vmatpush2.xpose.msra.mxu0 0.0
    %818 = vmatprep.subr.mxu0 0.0
    %819 = vmatpush2.xpose.msra.mxu0 0.0
    %820 = vmatprep.subr.mxu0 0.0
    %821 = vmatpush2.xpose.msra.mxu0 0.0
    %822 = vmatprep.subr.mxu0 0.0
    %823 = vmatpush2.xpose.msra.mxu0 0.0
    %824 = vmatprep.subr.mxu0 0.0
    %825 = vmatpush2.xpose.msra.mxu0 0.0
    %826 = vmatprep.subr.mxu0 0.0
    %827 = vmatpush2.xpose.msra.mxu0 0.0
    %828 = vmatprep.subr.mxu0 0.0
    %829 = vmatpush2.xpose.msra.mxu0 0.0
    %830 = vmatprep.subr.mxu0 0.0
    %831 = vmatpush2.xpose.msra.mxu0 0.0
    %832 = vmatprep.subr.mxu0 0.0
    %833 = vmatpush2.xpose.msra.mxu0 0.0
    %834 = vmatprep.subr.mxu0 0.0
    %835 = vmatpush2.xpose.msra.mxu0 0.0
    %836 = vmatprep.mubr.f32.mxu0 0.0
    %837 = vmatmul.mubr.f32.gmra.mxu0 %v768
    %v838 = vpop.f32.mrf.mxu0
    %v839 = vadd.f32 0.0, %v838
    %v840 = vpop.f32.mrf.mxu0
    %841 = vdwg.mxu0
    %842 = vrot.lane.b32.xlu0 %v102, 112
    %v843 = vpop.permute.xlu0 %842
    %844 = vrot.lane.b32.xlu0 %v102, 80
    %v845 = vpop.permute.xlu0 %844
    %v846 = vsel %vm108, %v843, 0
    %v848 = vsel %vm108, %v845, 0
    %850 = vmatprep.subr.mxu0 0.0
    %851 = vmatpush1.xpose.msra.mxu0 0.0
    %852 = vmatprep.subr.mxu0 0.0
    %853 = vmatpush1.xpose.msra.mxu0 0.0
    %854 = vmatprep.subr.mxu0 0.0
    %855 = vmatpush1.xpose.msra.mxu0 0.0
    %856 = vmatprep.subr.mxu0 0.0
    %857 = vmatpush1.xpose.msra.mxu0 0.0
    %858 = vmatprep.subr.mxu0 0.0
    %859 = vmatpush1.xpose.msra.mxu0 0.0
    %860 = vmatprep.subr.mxu0 0.0
    %861 = vmatpush1.xpose.msra.mxu0 0.0
    %862 = vmatprep.subr.mxu0 0.0
    %863 = vmatpush1.xpose.msra.mxu0 0.0
    %864 = vmatprep.subr.mxu0 0.0
    %865 = vmatpush1.xpose.msra.mxu0 0.0
    %866 = vmatprep.subr.mxu0 0.0
    %867 = vmatpush1.xpose.msra.mxu0 0.0
    %868 = vmatprep.subr.mxu0 0.0
    %869 = vmatpush1.xpose.msra.mxu0 0.0
    %870 = vmatprep.subr.mxu0 0.0
    %871 = vmatpush1.xpose.msra.mxu0 0.0
    %872 = vmatprep.subr.mxu0 0.0
    %873 = vmatpush1.xpose.msra.mxu0 0.0
    %874 = vmatprep.subr.mxu0 0.0
    %875 = vmatpush1.xpose.msra.mxu0 0.0
    %876 = vmatprep.subr.mxu0 0.0
    %877 = vmatpush1.xpose.msra.mxu0 0.0
    %878 = vmatprep.subr.mxu0 0.0
    %879 = vmatpush1.xpose.msra.mxu0 0.0
    %880 = vmatprep.subr.mxu0 0.0
    %881 = vmatpush1.xpose.msra.mxu0 %v848
    %882 = vmatprep.subr.mxu0 0.0
    %883 = vmatpush2.xpose.msra.mxu0 0.0
    %884 = vmatprep.subr.mxu0 0.0
    %885 = vmatpush2.xpose.msra.mxu0 0.0
    %886 = vmatprep.subr.mxu0 0.0
    %887 = vmatpush2.xpose.msra.mxu0 0.0
    %888 = vmatprep.subr.mxu0 0.0
    %889 = vmatpush2.xpose.msra.mxu0 0.0
    %890 = vmatprep.subr.mxu0 0.0
    %891 = vmatpush2.xpose.msra.mxu0 0.0
    %892 = vmatprep.subr.mxu0 0.0
    %893 = vmatpush2.xpose.msra.mxu0 0.0
    %894 = vmatprep.subr.mxu0 0.0
    %895 = vmatpush2.xpose.msra.mxu0 0.0
    %896 = vmatprep.subr.mxu0 0.0
    %897 = vmatpush2.xpose.msra.mxu0 0.0
    %898 = vmatprep.subr.mxu0 0.0
    %899 = vmatpush2.xpose.msra.mxu0 0.0
    %900 = vmatprep.subr.mxu0 0.0
    %901 = vmatpush2.xpose.msra.mxu0 0.0
    %902 = vmatprep.subr.mxu0 0.0
    %903 = vmatpush2.xpose.msra.mxu0 0.0
    %904 = vmatprep.subr.mxu0 0.0
    %905 = vmatpush2.xpose.msra.mxu0 0.0
    %906 = vmatprep.subr.mxu0 0.0
    %907 = vmatpush2.xpose.msra.mxu0 0.0
    %908 = vmatprep.subr.mxu0 0.0
    %909 = vmatpush2.xpose.msra.mxu0 0.0
    %910 = vmatprep.subr.mxu0 0.0
    %911 = vmatpush2.xpose.msra.mxu0 0.0
    %912 = vmatprep.subr.mxu0 0.0
    %913 = vmatpush2.xpose.msra.mxu0 0.0
    %914 = vmatprep.mubr.f32.mxu0 0.0
    %915 = vmatmul.mubr.f32.gmra.mxu0 %v846
    %v916 = vpop.f32.mrf.mxu0
    %v917 = vadd.f32 0.0, %v916
    %v918 = vpop.f32.mrf.mxu0
    %919 = vdwg.mxu0
    %v920 = vsel %vm108, %v839, -inf
    %921 = vmax.xlane.f32.xlu0 %v920
    %v922 = vpop.xlane.xlu0 %921
    %v923 = vsel %vm108, %v917, -inf
    %924 = vmax.xlane.f32.xlu0 %v923
    %v925 = vpop.xlane.xlu0 %924
    %v926 = vsub.f32 %v839, %v922
    %v927 = vsub.f32 %v917, %v925
    %v928 = vmul.f32 %v926, 1.442695
    %v929 = vpow.pop %v928
    %v930 = vmul.f32 %v927, 1.442695
    %v931 = vpow.pop %v930
    %v932 = vsel %vm108, %v929, 0.0
    %933 = vadd.xlane.f32.xlu0 %v932
    %v934 = vpop.xlane.xlu0 %933
    %v935 = vsel %vm108, %v931, 0.0
    %936 = vadd.xlane.f32.xlu0 %v935
    %v937 = vpop.xlane.xlu0 %936
    %v938 = vrcp.pop %v934
    %v939 = vrcp.pop %v937
    %v940 = vmul.f32 %v929, %v938
    %v941 = vmul.f32 %v931, %v939
    %942 = vrot.lane.b32.xlu0 %v99, 48
    %v943 = vpop.permute.xlu0 %942
    %v946 = vsel %vm108, %v940, 0
    %948 = vmatprep.subr.mxu0 0.0
    %949 = vmatpush1.msra.mxu0 0.0
    %950 = vmatprep.subr.mxu0 0.0
    %951 = vmatpush1.msra.mxu0 0.0
    %952 = vmatprep.subr.mxu0 0.0
    %953 = vmatpush1.msra.mxu0 0.0
    %954 = vmatprep.subr.mxu0 0.0
    %955 = vmatpush1.msra.mxu0 0.0
    %956 = vmatprep.subr.mxu0 0.0
    %957 = vmatpush1.msra.mxu0 0.0
    %958 = vmatprep.subr.mxu0 0.0
    %959 = vmatpush1.msra.mxu0 0.0
    %960 = vmatprep.subr.mxu0 0.0
    %961 = vmatpush1.msra.mxu0 0.0
    %962 = vmatprep.subr.mxu0 0.0
    %963 = vmatpush1.msra.mxu0 0.0
    %964 = vmatprep.subr.mxu0 0.0
    %965 = vmatpush1.msra.mxu0 0.0
    %966 = vmatprep.subr.mxu0 0.0
    %967 = vmatpush1.msra.mxu0 0.0
    %968 = vmatprep.subr.mxu0 0.0
    %969 = vmatpush1.msra.mxu0 0.0
    %970 = vmatprep.subr.mxu0 0.0
    %971 = vmatpush1.msra.mxu0 0.0
    %972 = vmatprep.subr.mxu0 0.0
    %973 = vmatpush1.msra.mxu0 0.0
    %974 = vmatprep.subr.mxu0 0.0
    %975 = vmatpush1.msra.mxu0 0.0
    %976 = vmatprep.subr.mxu0 0.0
    %977 = vmatpush1.msra.mxu0 0.0
    %978 = vmatprep.subr.mxu0 0.0
    %979 = vmatpush1.msra.mxu0 %v943
    %980 = vmatprep.subr.mxu0 0.0
    %981 = vmatpush2.msra.mxu0 0.0
    %982 = vmatprep.subr.mxu0 0.0
    %983 = vmatpush2.msra.mxu0 0.0
    %984 = vmatprep.subr.mxu0 0.0
    %985 = vmatpush2.msra.mxu0 0.0
    %986 = vmatprep.subr.mxu0 0.0
    %987 = vmatpush2.msra.mxu0 0.0
    %988 = vmatprep.subr.mxu0 0.0
    %989 = vmatpush2.msra.mxu0 0.0
    %990 = vmatprep.subr.mxu0 0.0
    %991 = vmatpush2.msra.mxu0 0.0
    %992 = vmatprep.subr.mxu0 0.0
    %993 = vmatpush2.msra.mxu0 0.0
    %994 = vmatprep.subr.mxu0 0.0
    %995 = vmatpush2.msra.mxu0 0.0
    %996 = vmatprep.subr.mxu0 0.0
    %997 = vmatpush2.msra.mxu0 0.0
    %998 = vmatprep.subr.mxu0 0.0
    %999 = vmatpush2.msra.mxu0 0.0
    %1000 = vmatprep.subr.mxu0 0.0
    %1001 = vmatpush2.msra.mxu0 0.0
    %1002 = vmatprep.subr.mxu0 0.0
    %1003 = vmatpush2.msra.mxu0 0.0
    %1004 = vmatprep.subr.mxu0 0.0
    %1005 = vmatpush2.msra.mxu0 0.0
    %1006 = vmatprep.subr.mxu0 0.0
    %1007 = vmatpush2.msra.mxu0 0.0
    %1008 = vmatprep.subr.mxu0 0.0
    %1009 = vmatpush2.msra.mxu0 0.0
    %1010 = vmatprep.subr.mxu0 0.0
    %1011 = vmatpush2.msra.mxu0 0.0
    %1012 = vmatprep.mubr.f32.mxu0 0.0
    %1013 = vmatmul.mubr.f32.gmra.mxu0 %v946
    %v1014 = vpop.f32.mrf.mxu0
    %v1015 = vadd.f32 0.0, %v1014
    %v1016 = vpop.f32.mrf.mxu0
    %1017 = vdwg.mxu0
    %1018 = vrot.lane.b32.xlu0 %v102, 48
    %v1019 = vpop.permute.xlu0 %1018
    %v1022 = vsel %vm108, %v941, 0
    %1024 = vmatprep.subr.mxu0 0.0
    %1025 = vmatpush1.msra.mxu0 0.0
    %1026 = vmatprep.subr.mxu0 0.0
    %1027 = vmatpush1.msra.mxu0 0.0
    %1028 = vmatprep.subr.mxu0 0.0
    %1029 = vmatpush1.msra.mxu0 0.0
    %1030 = vmatprep.subr.mxu0 0.0
    %1031 = vmatpush1.msra.mxu0 0.0
    %1032 = vmatprep.subr.mxu0 0.0
    %1033 = vmatpush1.msra.mxu0 0.0
    %1034 = vmatprep.subr.mxu0 0.0
    %1035 = vmatpush1.msra.mxu0 0.0
    %1036 = vmatprep.subr.mxu0 0.0
    %1037 = vmatpush1.msra.mxu0 0.0
    %1038 = vmatprep.subr.mxu0 0.0
    %1039 = vmatpush1.msra.mxu0 0.0
    %1040 = vmatprep.subr.mxu0 0.0
    %1041 = vmatpush1.msra.mxu0 0.0
    %1042 = vmatprep.subr.mxu0 0.0
    %1043 = vmatpush1.msra.mxu0 0.0
    %1044 = vmatprep.subr.mxu0 0.0
    %1045 = vmatpush1.msra.mxu0 0.0
    %1046 = vmatprep.subr.mxu0 0.0
    %1047 = vmatpush1.msra.mxu0 0.0
    %1048 = vmatprep.subr.mxu0 0.0
    %1049 = vmatpush1.msra.mxu0 0.0
    %1050 = vmatprep.subr.mxu0 0.0
    %1051 = vmatpush1.msra.mxu0 0.0
    %1052 = vmatprep.subr.mxu0 0.0
    %1053 = vmatpush1.msra.mxu0 0.0
    %1054 = vmatprep.subr.mxu0 0.0
    %1055 = vmatpush1.msra.mxu0 %v1019
    %1056 = vmatprep.subr.mxu0 0.0
    %1057 = vmatpush2.msra.mxu0 0.0
    %1058 = vmatprep.subr.mxu0 0.0
    %1059 = vmatpush2.msra.mxu0 0.0
    %1060 = vmatprep.subr.mxu0 0.0
    %1061 = vmatpush2.msra.mxu0 0.0
    %1062 = vmatprep.subr.mxu0 0.0
    %1063 = vmatpush2.msra.mxu0 0.0
    %1064 = vmatprep.subr.mxu0 0.0
    %1065 = vmatpush2.msra.mxu0 0.0
    %1066 = vmatprep.subr.mxu0 0.0
    %1067 = vmatpush2.msra.mxu0 0.0
    %1068 = vmatprep.subr.mxu0 0.0
    %1069 = vmatpush2.msra.mxu0 0.0
    %1070 = vmatprep.subr.mxu0 0.0
    %1071 = vmatpush2.msra.mxu0 0.0
    %1072 = vmatprep.subr.mxu0 0.0
    %1073 = vmatpush2.msra.mxu0 0.0
    %1074 = vmatprep.subr.mxu0 0.0
    %1075 = vmatpush2.msra.mxu0 0.0
    %1076 = vmatprep.subr.mxu0 0.0
    %1077 = vmatpush2.msra.mxu0 0.0
    %1078 = vmatprep.subr.mxu0 0.0
    %1079 = vmatpush2.msra.mxu0 0.0
    %1080 = vmatprep.subr.mxu0 0.0
    %1081 = vmatpush2.msra.mxu0 0.0
    %1082 = vmatprep.subr.mxu0 0.0
    %1083 = vmatpush2.msra.mxu0 0.0
    %1084 = vmatprep.subr.mxu0 0.0
    %1085 = vmatpush2.msra.mxu0 0.0
    %1086 = vmatprep.subr.mxu0 0.0
    %1087 = vmatpush2.msra.mxu0 0.0
    %1088 = vmatprep.mubr.f32.mxu0 0.0
    %1089 = vmatmul.mubr.f32.gmra.mxu0 %v1022
    %v1090 = vpop.f32.mrf.mxu0
    %v1091 = vadd.f32 0.0, %v1090
    %v1092 = vpop.f32.mrf.mxu0
    %1093 = vdwg.mxu0
    %1094 = vrot.lane.b32.xlu0 %v99, 104
    %v1095 = vpop.permute.xlu0 %1094
    %1096 = vrot.lane.b32.xlu0 %v99, 72
    %v1097 = vpop.permute.xlu0 %1096
    %v1098 = vsel %vm108, %v1095, 0
    %v1100 = vsel %vm108, %v1097, 0
    %1102 = vmatprep.subr.mxu0 0.0
    %1103 = vmatpush1.xpose.msra.mxu0 0.0
    %1104 = vmatprep.subr.mxu0 0.0
    %1105 = vmatpush1.xpose.msra.mxu0 0.0
    %1106 = vmatprep.subr.mxu0 0.0
    %1107 = vmatpush1.xpose.msra.mxu0 0.0
    %1108 = vmatprep.subr.mxu0 0.0
    %1109 = vmatpush1.xpose.msra.mxu0 0.0
    %1110 = vmatprep.subr.mxu0 0.0
    %1111 = vmatpush1.xpose.msra.mxu0 0.0
    %1112 = vmatprep.subr.mxu0 0.0
    %1113 = vmatpush1.xpose.msra.mxu0 0.0
    %1114 = vmatprep.subr.mxu0 0.0
    %1115 = vmatpush1.xpose.msra.mxu0 0.0
    %1116 = vmatprep.subr.mxu0 0.0
    %1117 = vmatpush1.xpose.msra.mxu0 0.0
    %1118 = vmatprep.subr.mxu0 0.0
    %1119 = vmatpush1.xpose.msra.mxu0 0.0
    %1120 = vmatprep.subr.mxu0 0.0
    %1121 = vmatpush1.xpose.msra.mxu0 0.0
    %1122 = vmatprep.subr.mxu0 0.0
    %1123 = vmatpush1.xpose.msra.mxu0 0.0
    %1124 = vmatprep.subr.mxu0 0.0
    %1125 = vmatpush1.xpose.msra.mxu0 0.0
    %1126 = vmatprep.subr.mxu0 0.0
    %1127 = vmatpush1.xpose.msra.mxu0 0.0
    %1128 = vmatprep.subr.mxu0 0.0
    %1129 = vmatpush1.xpose.msra.mxu0 0.0
    %1130 = vmatprep.subr.mxu0 0.0
    %1131 = vmatpush1.xpose.msra.mxu0 0.0
    %1132 = vmatprep.subr.mxu0 0.0
    %1133 = vmatpush1.xpose.msra.mxu0 %v1100
    %1134 = vmatprep.subr.mxu0 0.0
    %1135 = vmatpush2.xpose.msra.mxu0 0.0
    %1136 = vmatprep.subr.mxu0 0.0
    %1137 = vmatpush2.xpose.msra.mxu0 0.0
    %1138 = vmatprep.subr.mxu0 0.0
    %1139 = vmatpush2.xpose.msra.mxu0 0.0
    %1140 = vmatprep.subr.mxu0 0.0
    %1141 = vmatpush2.xpose.msra.mxu0 0.0
    %1142 = vmatprep.subr.mxu0 0.0
    %1143 = vmatpush2.xpose.msra.mxu0 0.0
    %1144 = vmatprep.subr.mxu0 0.0
    %1145 = vmatpush2.xpose.msra.mxu0 0.0
    %1146 = vmatprep.subr.mxu0 0.0
    %1147 = vmatpush2.xpose.msra.mxu0 0.0
    %1148 = vmatprep.subr.mxu0 0.0
    %1149 = vmatpush2.xpose.msra.mxu0 0.0
    %1150 = vmatprep.subr.mxu0 0.0
    %1151 = vmatpush2.xpose.msra.mxu0 0.0
    %1152 = vmatprep.subr.mxu0 0.0
    %1153 = vmatpush2.xpose.msra.mxu0 0.0
    %1154 = vmatprep.subr.mxu0 0.0
    %1155 = vmatpush2.xpose.msra.mxu0 0.0
    %1156 = vmatprep.subr.mxu0 0.0
    %1157 = vmatpush2.xpose.msra.mxu0 0.0
    %1158 = vmatprep.subr.mxu0 0.0
    %1159 = vmatpush2.xpose.msra.mxu0 0.0
    %1160 = vmatprep.subr.mxu0 0.0
    %1161 = vmatpush2.xpose.msra.mxu0 0.0
    %1162 = vmatprep.subr.mxu0 0.0
    %1163 = vmatpush2.xpose.msra.mxu0 0.0
    %1164 = vmatprep.subr.mxu0 0.0
    %1165 = vmatpush2.xpose.msra.mxu0 0.0
    %1166 = vmatprep.mubr.f32.mxu0 0.0
    %1167 = vmatmul.mubr.f32.gmra.mxu0 %v1098
    %v1168 = vpop.f32.mrf.mxu0
    %v1169 = vadd.f32 0.0, %v1168
    %v1170 = vpop.f32.mrf.mxu0
    %1171 = vdwg.mxu0
    %1172 = vrot.lane.b32.xlu0 %v102, 104
    %v1173 = vpop.permute.xlu0 %1172
    %1174 = vrot.lane.b32.xlu0 %v102, 72
    %v1175 = vpop.permute.xlu0 %1174
    %v1176 = vsel %vm108, %v1173, 0
    %v1178 = vsel %vm108, %v1175, 0
    %1180 = vmatprep.subr.mxu0 0.0
    %1181 = vmatpush1.xpose.msra.mxu0 0.0
    %1182 = vmatprep.subr.mxu0 0.0
    %1183 = vmatpush1.xpose.msra.mxu0 0.0
    %1184 = vmatprep.subr.mxu0 0.0
    %1185 = vmatpush1.xpose.msra.mxu0 0.0
    %1186 = vmatprep.subr.mxu0 0.0
    %1187 = vmatpush1.xpose.msra.mxu0 0.0
    %1188 = vmatprep.subr.mxu0 0.0
    %1189 = vmatpush1.xpose.msra.mxu0 0.0
    %1190 = vmatprep.subr.mxu0 0.0
    %1191 = vmatpush1.xpose.msra.mxu0 0.0
    %1192 = vmatprep.subr.mxu0 0.0
    %1193 = vmatpush1.xpose.msra.mxu0 0.0
    %1194 = vmatprep.subr.mxu0 0.0
    %1195 = vmatpush1.xpose.msra.mxu0 0.0
    %1196 = vmatprep.subr.mxu0 0.0
    %1197 = vmatpush1.xpose.msra.mxu0 0.0
    %1198 = vmatprep.subr.mxu0 0.0
    %1199 = vmatpush1.xpose.msra.mxu0 0.0
    %1200 = vmatprep.subr.mxu0 0.0
    %1201 = vmatpush1.xpose.msra.mxu0 0.0
    %1202 = vmatprep.subr.mxu0 0.0
    %1203 = vmatpush1.xpose.msra.mxu0 0.0
    %1204 = vmatprep.subr.mxu0 0.0
    %1205 = vmatpush1.xpose.msra.mxu0 0.0
    %1206 = vmatprep.subr.mxu0 0.0
    %1207 = vmatpush1.xpose.msra.mxu0 0.0
    %1208 = vmatprep.subr.mxu0 0.0
    %1209 = vmatpush1.xpose.msra.mxu0 0.0
    %1210 = vmatprep.subr.mxu0 0.0
    %1211 = vmatpush1.xpose.msra.mxu0 %v1178
    %1212 = vmatprep.subr.mxu0 0.0
    %1213 = vmatpush2.xpose.msra.mxu0 0.0
    %1214 = vmatprep.subr.mxu0 0.0
    %1215 = vmatpush2.xpose.msra.mxu0 0.0
    %1216 = vmatprep.subr.mxu0 0.0
    %1217 = vmatpush2.xpose.msra.mxu0 0.0
    %1218 = vmatprep.subr.mxu0 0.0
    %1219 = vmatpush2.xpose.msra.mxu0 0.0
    %1220 = vmatprep.subr.mxu0 0.0
    %1221 = vmatpush2.xpose.msra.mxu0 0.0
    %1222 = vmatprep.subr.mxu0 0.0
    %1223 = vmatpush2.xpose.msra.mxu0 0.0
    %1224 = vmatprep.subr.mxu0 0.0
    %1225 = vmatpush2.xpose.msra.mxu0 0.0
    %1226 = vmatprep.subr.mxu0 0.0
    %1227 = vmatpush2.xpose.msra.mxu0 0.0
    %1228 = vmatprep.subr.mxu0 0.0
    %1229 = vmatpush2.xpose.msra.mxu0 0.0
    %1230 = vmatprep.subr.mxu0 0.0
    %1231 = vmatpush2.xpose.msra.mxu0 0.0
    %1232 = vmatprep.subr.mxu0 0.0
    %1233 = vmatpush2.xpose.msra.mxu0 0.0
    %1234 = vmatprep.subr.mxu0 0.0
    %1235 = vmatpush2.xpose.msra.mxu0 0.0
    %1236 = vmatprep.subr.mxu0 0.0
    %1237 = vmatpush2.xpose.msra.mxu0 0.0
    %1238 = vmatprep.subr.mxu0 0.0
    %1239 = vmatpush2.xpose.msra.mxu0 0.0
    %1240 = vmatprep.subr.mxu0 0.0
    %1241 = vmatpush2.xpose.msra.mxu0 0.0
    %1242 = vmatprep.subr.mxu0 0.0
    %1243 = vmatpush2.xpose.msra.mxu0 0.0
    %1244 = vmatprep.mubr.f32.mxu0 0.0
    %1245 = vmatmul.mubr.f32.gmra.mxu0 %v1176
    %v1246 = vpop.f32.mrf.mxu0
    %v1247 = vadd.f32 0.0, %v1246
    %v1248 = vpop.f32.mrf.mxu0
    %1249 = vdwg.mxu0
    %v1250 = vsel %vm108, %v1169, -inf
    %1251 = vmax.xlane.f32.xlu0 %v1250
    %v1252 = vpop.xlane.xlu0 %1251
    %v1253 = vsel %vm108, %v1247, -inf
    %1254 = vmax.xlane.f32.xlu0 %v1253
    %v1255 = vpop.xlane.xlu0 %1254
    %v1256 = vsub.f32 %v1169, %v1252
    %v1257 = vsub.f32 %v1247, %v1255
    %v1258 = vmul.f32 %v1256, 1.442695
    %v1259 = vpow.pop %v1258
    %v1260 = vmul.f32 %v1257, 1.442695
    %v1261 = vpow.pop %v1260
    %v1262 = vsel %vm108, %v1259, 0.0
    %1263 = vadd.xlane.f32.xlu0 %v1262
    %v1264 = vpop.xlane.xlu0 %1263
    %v1265 = vsel %vm108, %v1261, 0.0
    %1266 = vadd.xlane.f32.xlu0 %v1265
    %v1267 = vpop.xlane.xlu0 %1266
    %v1268 = vrcp.pop %v1264
    %v1269 = vrcp.pop %v1267
    %v1270 = vmul.f32 %v1259, %v1268
    %v1271 = vmul.f32 %v1261, %v1269
    %1272 = vrot.lane.b32.xlu0 %v99, 40
    %v1273 = vpop.permute.xlu0 %1272
    %v1276 = vsel %vm108, %v1270, 0
    %1278 = vmatprep.subr.mxu0 0.0
    %1279 = vmatpush1.msra.mxu0 0.0
    %1280 = vmatprep.subr.mxu0 0.0
    %1281 = vmatpush1.msra.mxu0 0.0
    %1282 = vmatprep.subr.mxu0 0.0
    %1283 = vmatpush1.msra.mxu0 0.0
    %1284 = vmatprep.subr.mxu0 0.0
    %1285 = vmatpush1.msra.mxu0 0.0
    %1286 = vmatprep.subr.mxu0 0.0
    %1287 = vmatpush1.msra.mxu0 0.0
    %1288 = vmatprep.subr.mxu0 0.0
    %1289 = vmatpush1.msra.mxu0 0.0
    %1290 = vmatprep.subr.mxu0 0.0
    %1291 = vmatpush1.msra.mxu0 0.0
    %1292 = vmatprep.subr.mxu0 0.0
    %1293 = vmatpush1.msra.mxu0 0.0
    %1294 = vmatprep.subr.mxu0 0.0
    %1295 = vmatpush1.msra.mxu0 0.0
    %1296 = vmatprep.subr.mxu0 0.0
    %1297 = vmatpush1.msra.mxu0 0.0
    %1298 = vmatprep.subr.mxu0 0.0
    %1299 = vmatpush1.msra.mxu0 0.0
    %1300 = vmatprep.subr.mxu0 0.0
    %1301 = vmatpush1.msra.mxu0 0.0
    %1302 = vmatprep.subr.mxu0 0.0
    %1303 = vmatpush1.msra.mxu0 0.0
    %1304 = vmatprep.subr.mxu0 0.0
    %1305 = vmatpush1.msra.mxu0 0.0
    %1306 = vmatprep.subr.mxu0 0.0
    %1307 = vmatpush1.msra.mxu0 0.0
    %1308 = vmatprep.subr.mxu0 0.0
    %1309 = vmatpush1.msra.mxu0 %v1273
    %1310 = vmatprep.subr.mxu0 0.0
    %1311 = vmatpush2.msra.mxu0 0.0
    %1312 = vmatprep.subr.mxu0 0.0
    %1313 = vmatpush2.msra.mxu0 0.0
    %1314 = vmatprep.subr.mxu0 0.0
    %1315 = vmatpush2.msra.mxu0 0.0
    %1316 = vmatprep.subr.mxu0 0.0
    %1317 = vmatpush2.msra.mxu0 0.0
    %1318 = vmatprep.subr.mxu0 0.0
    %1319 = vmatpush2.msra.mxu0 0.0
    %1320 = vmatprep.subr.mxu0 0.0
    %1321 = vmatpush2.msra.mxu0 0.0
    %1322 = vmatprep.subr.mxu0 0.0
    %1323 = vmatpush2.msra.mxu0 0.0
    %1324 = vmatprep.subr.mxu0 0.0
    %1325 = vmatpush2.msra.mxu0 0.0
    %1326 = vmatprep.subr.mxu0 0.0
    %1327 = vmatpush2.msra.mxu0 0.0
    %1328 = vmatprep.subr.mxu0 0.0
    %1329 = vmatpush2.msra.mxu0 0.0
    %1330 = vmatprep.subr.mxu0 0.0
    %1331 = vmatpush2.msra.mxu0 0.0
    %1332 = vmatprep.subr.mxu0 0.0
    %1333 = vmatpush2.msra.mxu0 0.0
    %1334 = vmatprep.subr.mxu0 0.0
    %1335 = vmatpush2.msra.mxu0 0.0
    %1336 = vmatprep.subr.mxu0 0.0
    %1337 = vmatpush2.msra.mxu0 0.0
    %1338 = vmatprep.subr.mxu0 0.0
    %1339 = vmatpush2.msra.mxu0 0.0
    %1340 = vmatprep.subr.mxu0 0.0
    %1341 = vmatpush2.msra.mxu0 0.0
    %1342 = vmatprep.mubr.f32.mxu0 0.0
    %1343 = vmatmul.mubr.f32.gmra.mxu0 %v1276
    %v1344 = vpop.f32.mrf.mxu0
    %v1345 = vadd.f32 0.0, %v1344
    %v1346 = vpop.f32.mrf.mxu0
    %1347 = vdwg.mxu0
    %1348 = vrot.lane.b32.xlu0 %v102, 40
    %v1349 = vpop.permute.xlu0 %1348
    %v1352 = vsel %vm108, %v1271, 0
    %1354 = vmatprep.subr.mxu0 0.0
    %1355 = vmatpush1.msra.mxu0 0.0
    %1356 = vmatprep.subr.mxu0 0.0
    %1357 = vmatpush1.msra.mxu0 0.0
    %1358 = vmatprep.subr.mxu0 0.0
    %1359 = vmatpush1.msra.mxu0 0.0
    %1360 = vmatprep.subr.mxu0 0.0
    %1361 = vmatpush1.msra.mxu0 0.0
    %1362 = vmatprep.subr.mxu0 0.0
    %1363 = vmatpush1.msra.mxu0 0.0
    %1364 = vmatprep.subr.mxu0 0.0
    %1365 = vmatpush1.msra.mxu0 0.0
    %1366 = vmatprep.subr.mxu0 0.0
    %1367 = vmatpush1.msra.mxu0 0.0
    %1368 = vmatprep.subr.mxu0 0.0
    %1369 = vmatpush1.msra.mxu0 0.0
    %1370 = vmatprep.subr.mxu0 0.0
    %1371 = vmatpush1.msra.mxu0 0.0
    %1372 = vmatprep.subr.mxu0 0.0
    %1373 = vmatpush1.msra.mxu0 0.0
    %1374 = vmatprep.subr.mxu0 0.0
    %1375 = vmatpush1.msra.mxu0 0.0
    %1376 = vmatprep.subr.mxu0 0.0
    %1377 = vmatpush1.msra.mxu0 0.0
    %1378 = vmatprep.subr.mxu0 0.0
    %1379 = vmatpush1.msra.mxu0 0.0
    %1380 = vmatprep.subr.mxu0 0.0
    %1381 = vmatpush1.msra.mxu0 0.0
    %1382 = vmatprep.subr.mxu0 0.0
    %1383 = vmatpush1.msra.mxu0 0.0
    %1384 = vmatprep.subr.mxu0 0.0
    %1385 = vmatpush1.msra.mxu0 %v1349
    %1386 = vmatprep.subr.mxu0 0.0
    %1387 = vmatpush2.msra.mxu0 0.0
    %1388 = vmatprep.subr.mxu0 0.0
    %1389 = vmatpush2.msra.mxu0 0.0
    %1390 = vmatprep.subr.mxu0 0.0
    %1391 = vmatpush2.msra.mxu0 0.0
    %1392 = vmatprep.subr.mxu0 0.0
    %1393 = vmatpush2.msra.mxu0 0.0
    %1394 = vmatprep.subr.mxu0 0.0
    %1395 = vmatpush2.msra.mxu0 0.0
    %1396 = vmatprep.subr.mxu0 0.0
    %1397 = vmatpush2.msra.mxu0 0.0
    %1398 = vmatprep.subr.mxu0 0.0
    %1399 = vmatpush2.msra.mxu0 0.0
    %1400 = vmatprep.subr.mxu0 0.0
    %1401 = vmatpush2.msra.mxu0 0.0
    %1402 = vmatprep.subr.mxu0 0.0
    %1403 = vmatpush2.msra.mxu0 0.0
    %1404 = vmatprep.subr.mxu0 0.0
    %1405 = vmatpush2.msra.mxu0 0.0
    %1406 = vmatprep.subr.mxu0 0.0
    %1407 = vmatpush2.msra.mxu0 0.0
    %1408 = vmatprep.subr.mxu0 0.0
    %1409 = vmatpush2.msra.mxu0 0.0
    %1410 = vmatprep.subr.mxu0 0.0
    %1411 = vmatpush2.msra.mxu0 0.0
    %1412 = vmatprep.subr.mxu0 0.0
    %1413 = vmatpush2.msra.mxu0 0.0
    %1414 = vmatprep.subr.mxu0 0.0
    %1415 = vmatpush2.msra.mxu0 0.0
    %1416 = vmatprep.subr.mxu0 0.0
    %1417 = vmatpush2.msra.mxu0 0.0
    %1418 = vmatprep.mubr.f32.mxu0 0.0
    %1419 = vmatmul.mubr.f32.gmra.mxu0 %v1352
    %v1420 = vpop.f32.mrf.mxu0
    %v1421 = vadd.f32 0.0, %v1420
    %v1422 = vpop.f32.mrf.mxu0
    %1423 = vdwg.mxu0
    %1426 = vrot.lane.b32.xlu0 %v685, 8
    %v1427 = vpop.permute.xlu0 %1426
    %1428 = vrot.lane.b32.xlu0 %v761, 8
    %v1429 = vpop.permute.xlu0 %1428
    %1434 = vrot.lane.b32.xlu0 %v1015, 16
    %v1435 = vpop.permute.xlu0 %1434
    %1436 = vrot.lane.b32.xlu0 %v1091, 16
    %v1437 = vpop.permute.xlu0 %1436
    %1442 = vrot.lane.b32.xlu0 %v1345, 24
    %v1443 = vpop.permute.xlu0 %1442
    %1444 = vrot.lane.b32.xlu0 %v1421, 24
    %v1445 = vpop.permute.xlu0 %1444
    %v1448 = vsel %vm108, %v355, %v1427
    %v1449 = vsel %vm108, %v431, %v1429
    %vm1450 = vcmask 130048
    %v1451 = vsel %vm1450, %v1448, %v1435
    %v1452 = vsel %vm1450, %v1449, %v1437
    %vm1453 = vcmask 195584
    %v1454 = vsel %vm1453, %v1451, %v1443
    %v1455 = vsel %vm1453, %v1452, %v1445
    %v1456 = vld [vmem:[%s4] sm:$0x1]
    %v1458 = vlaneseq
    %v1459 = vshrl.u32 %v1458, 7
    %v1460 = vsub.s32 0, %v1459
    %v1461 = vrot.slane %v1456, %v1460
    %v1463 = vadd.f32 %v34, %v1461
    %v1464 = vadd.f32 %v35, %v1461
    %v1465 = vpack.c.bf16 %v1455, %v1454
    %v1466 = vld [vmem:[%s3] sm:$0xf]
    %v1467 = vld [vmem:[%s3 + $0x4] sm:$0xf]
    %v1468 = vld [vmem:[%s3 + $0x8] sm:$0xf]
    %v1469 = vld [vmem:[%s3 + $0xc] sm:$0xf]
    %v1474 = vunpack.c.l.b16 %v1466
    %v1475 = vunpack.c.l.b16 %v1467
    %v1476 = vunpack.c.l.b16 %v1468
    %v1477 = vunpack.c.l.b16 %v1469
    %v1478 = vpack.c.b16 %v1475, %v1474
    %v1479 = vpack.c.b16 %v1477, %v1476
    %v1483 = vsel %vm60, %v1465, 0
    %1485 = vmatprep.subr.bf16.mxu0 0
    %1486 = vmatpush1.bf16.msra.mxu0 0
    %1487 = vmatprep.subr.bf16.mxu0 0
    %1488 = vmatpush1.bf16.msra.mxu0 0
    %1489 = vmatprep.subr.bf16.mxu0 0
    %1490 = vmatpush1.bf16.msra.mxu0 0
    %1491 = vmatprep.subr.bf16.mxu0 0
    %1492 = vmatpush1.bf16.msra.mxu0 0
    %1493 = vmatprep.subr.bf16.mxu0 0
    %1494 = vmatpush1.bf16.msra.mxu0 0
    %1495 = vmatprep.subr.bf16.mxu0 0
    %1496 = vmatpush1.bf16.msra.mxu0 0
    %1497 = vmatprep.subr.bf16.mxu0 0
    %1498 = vmatpush1.bf16.msra.mxu0 %v1479
    %1499 = vmatprep.subr.bf16.mxu0 0
    %1500 = vmatpush1.bf16.msra.mxu0 %v1478
    %1501 = vmatprep.subr.bf16.mxu0 0
    %1502 = vmatpush2.bf16.msra.mxu0 0
    %1503 = vmatprep.subr.bf16.mxu0 0
    %1504 = vmatpush2.bf16.msra.mxu0 0
    %1505 = vmatprep.subr.bf16.mxu0 0
    %1506 = vmatpush2.bf16.msra.mxu0 0
    %1507 = vmatprep.subr.bf16.mxu0 0
    %1508 = vmatpush2.bf16.msra.mxu0 0
    %1509 = vmatprep.subr.bf16.mxu0 0
    %1510 = vmatpush2.bf16.msra.mxu0 0
    %1511 = vmatprep.subr.bf16.mxu0 0
    %1512 = vmatpush2.bf16.msra.mxu0 0
    %1513 = vmatprep.subr.bf16.mxu0 0
    %1514 = vmatpush2.bf16.msra.mxu0 0
    %1515 = vmatprep.subr.bf16.mxu0 0
    %1516 = vmatpush2.bf16.msra.mxu0 0
    %1517 = vmatprep.mubr.bf16.mxu0 0
    %1518 = vmatmul.mubr.bf16.gmra.mxu0 %v1483
    %v1519 = vpop.f32.mrf.mxu0
    %v1520 = vadd.f32 0.0, %v1519
    %v1521 = vpop.f32.mrf.mxu0
    %v1522 = vpop.f32.mrf.mxu0
    %v1523 = vadd.f32 0.0, %v1522
    %v1524 = vpop.f32.mrf.mxu0
    %1525 = vdwg.mxu0
    %v1526 = vadd.f32 %v1463, %v1520
    %v1527 = vadd.f32 %v1464, %v1523
    %v1528 = vpack.c.bf16 %v1527, %v1526
    %v1529 = vld [vmem:[%s5] sm:$0xf]
    %v1530 = vld [vmem:[%s5 + $0x4] sm:$0xf]
    %v1531 = vld [vmem:[%s5 + $0x8] sm:$0xf]
    %v1532 = vld [vmem:[%s5 + $0xc] sm:$0xf]
    %v1533 = vld [vmem:[%s6] sm:$0x1]
    %v1535 = vlaneseq
    %v1536 = vshrl.u32 %v1535, 7
    %v1537 = vsub.s32 0, %v1536
    %v1538 = vrot.slane %v1533, %v1537
    %v1544 = vunpack.c.l.b16 %v1529
    %v1545 = vunpack.c.l.b16 %v1530
    %v1546 = vunpack.c.l.b16 %v1531
    %v1547 = vunpack.c.l.b16 %v1532
    %v1548 = vpack.c.b16 %v1545, %v1544
    %v1549 = vpack.c.b16 %v1547, %v1546
    %v1553 = vsel %vm60, %v1528, 0
    %1555 = vmatprep.subr.bf16.mxu0 0
    %1556 = vmatpush1.bf16.msra.mxu0 0
    %1557 = vmatprep.subr.bf16.mxu0 0
    %1558 = vmatpush1.bf16.msra.mxu0 0
    %1559 = vmatprep.subr.bf16.mxu0 0
    %1560 = vmatpush1.bf16.msra.mxu0 0
    %1561 = vmatprep.subr.bf16.mxu0 0
    %1562 = vmatpush1.bf16.msra.mxu0 0
    %1563 = vmatprep.subr.bf16.mxu0 0
    %1564 = vmatpush1.bf16.msra.mxu0 0
    %1565 = vmatprep.subr.bf16.mxu0 0
    %1566 = vmatpush1.bf16.msra.mxu0 0
    %1567 = vmatprep.subr.bf16.mxu0 0
    %1568 = vmatpush1.bf16.msra.mxu0 %v1549
    %1569 = vmatprep.subr.bf16.mxu0 0
    %1570 = vmatpush1.bf16.msra.mxu0 %v1548
    %1571 = vmatprep.subr.bf16.mxu0 0
    %1572 = vmatpush2.bf16.msra.mxu0 0
    %1573 = vmatprep.subr.bf16.mxu0 0
    %1574 = vmatpush2.bf16.msra.mxu0 0
    %1575 = vmatprep.subr.bf16.mxu0 0
    %1576 = vmatpush2.bf16.msra.mxu0 0
    %1577 = vmatprep.subr.bf16.mxu0 0
    %1578 = vmatpush2.bf16.msra.mxu0 0
    %1579 = vmatprep.subr.bf16.mxu0 0
    %1580 = vmatpush2.bf16.msra.mxu0 0
    %1581 = vmatprep.subr.bf16.mxu0 0
    %1582 = vmatpush2.bf16.msra.mxu0 0
    %1583 = vmatprep.subr.bf16.mxu0 0
    %1584 = vmatpush2.bf16.msra.mxu0 0
    %1585 = vmatprep.subr.bf16.mxu0 0
    %1586 = vmatpush2.bf16.msra.mxu0 0
    %1587 = vmatprep.mubr.bf16.mxu0 0
    %1588 = vmatmul.mubr.bf16.gmra.mxu0 %v1553
    %v1589 = vpop.f32.mrf.mxu0
    %v1590 = vadd.f32 %v1538, %v1589
    %v1591 = vpop.f32.mrf.mxu0
    %v1592 = vpop.f32.mrf.mxu0
    %v1593 = vadd.f32 %v1538, %v1592
    %v1594 = vpop.f32.mrf.mxu0
    %1595 = vdwg.mxu0
    %v1596 = vmax.f32 %v1590, 0.0
    %v1597 = vmax.f32 %v1593, 0.0
    %v1598 = vpack.c.bf16 %v1597, %v1596
    %v1599 = vld [vmem:[%s7] sm:$0xf]
    %v1600 = vld [vmem:[%s7 + $0x4] sm:$0xf]
    %v1601 = vld [vmem:[%s7 + $0x8] sm:$0xf]
    %v1602 = vld [vmem:[%s7 + $0xc] sm:$0xf]
    %v1603 = vld [vmem:[%s7 + $0x10] sm:$0xf]
    %v1604 = vld [vmem:[%s7 + $0x14] sm:$0xf]
    %v1605 = vld [vmem:[%s7 + $0x18] sm:$0xf]
    %v1606 = vld [vmem:[%s7 + $0x1c] sm:$0xf]
    %v1607 = vld [vmem:[%s7 + $0x20] sm:$0xf]
    %v1608 = vld [vmem:[%s7 + $0x24] sm:$0xf]
    %v1609 = vld [vmem:[%s7 + $0x28] sm:$0xf]
    %v1610 = vld [vmem:[%s7 + $0x2c] sm:$0xf]
    %v1611 = vld [vmem:[%s7 + $0x30] sm:$0xf]
    %v1612 = vld [vmem:[%s7 + $0x34] sm:$0xf]
    %v1613 = vld [vmem:[%s7 + $0x38] sm:$0xf]
    %v1614 = vld [vmem:[%s7 + $0x3c] sm:$0xf]
    %v1615 = vld [vmem:[%s8] sm:$0x1]
    %v1617 = vlaneseq
    %v1618 = vshrl.u32 %v1617, 7
    %v1619 = vsub.s32 0, %v1618
    %v1620 = vrot.slane %v1615, %v1619
    %v1638 = vunpack.c.l.b16 %v1599
    %v1639 = vunpack.c.l.b16 %v1600
    %v1640 = vunpack.c.l.b16 %v1601
    %v1641 = vunpack.c.l.b16 %v1602
    %v1642 = vunpack.c.l.b16 %v1603
    %v1643 = vunpack.c.l.b16 %v1604
    %v1644 = vunpack.c.l.b16 %v1605
    %v1645 = vunpack.c.l.b16 %v1606
    %v1646 = vunpack.c.l.b16 %v1607
    %v1647 = vunpack.c.l.b16 %v1608
    %v1648 = vunpack.c.l.b16 %v1609
    %v1649 = vunpack.c.l.b16 %v1610
    %v1650 = vunpack.c.l.b16 %v1611
    %v1651 = vunpack.c.l.b16 %v1612
    %v1652 = vunpack.c.l.b16 %v1613
    %v1653 = vunpack.c.l.b16 %v1614
    %v1654 = vpack.c.b16 %v1639, %v1638
    %v1655 = vpack.c.b16 %v1641, %v1640
    %v1656 = vpack.c.b16 %v1643, %v1642
    %v1657 = vpack.c.b16 %v1645, %v1644
    %v1658 = vpack.c.b16 %v1647, %v1646
    %v1659 = vpack.c.b16 %v1649, %v1648
    %v1660 = vpack.c.b16 %v1651, %v1650
    %v1661 = vpack.c.b16 %v1653, %v1652
    %1670 = vmatprep.subr.bf16.mxu0 0
    %1671 = vmatpush1.bf16.msra.mxu0 %v1661
    %1672 = vmatprep.subr.bf16.mxu0 0
    %1673 = vmatpush1.bf16.msra.mxu0 %v1660
    %1674 = vmatprep.subr.bf16.mxu0 0
    %1675 = vmatpush1.bf16.msra.mxu0 %v1659
    %1676 = vmatprep.subr.bf16.mxu0 0
    %1677 = vmatpush1.bf16.msra.mxu0 %v1658
    %1678 = vmatprep.subr.bf16.mxu0 0
    %1679 = vmatpush1.bf16.msra.mxu0 %v1657
    %1680 = vmatprep.subr.bf16.mxu0 0
    %1681 = vmatpush1.bf16.msra.mxu0 %v1656
    %1682 = vmatprep.subr.bf16.mxu0 0
    %1683 = vmatpush1.bf16.msra.mxu0 %v1655
    %1684 = vmatprep.subr.bf16.mxu0 0
    %1685 = vmatpush1.bf16.msra.mxu0 %v1654
    %1686 = vmatprep.subr.bf16.mxu0 0
    %1687 = vmatpush2.bf16.msra.mxu0 0
    %1688 = vmatprep.subr.bf16.mxu0 0
    %1689 = vmatpush2.bf16.msra.mxu0 0
    %1690 = vmatprep.subr.bf16.mxu0 0
    %1691 = vmatpush2.bf16.msra.mxu0 0
    %1692 = vmatprep.subr.bf16.mxu0 0
    %1693 = vmatpush2.bf16.msra.mxu0 0
    %1694 = vmatprep.subr.bf16.mxu0 0
    %1695 = vmatpush2.bf16.msra.mxu0 0
    %1696 = vmatprep.subr.bf16.mxu0 0
    %1697 = vmatpush2.bf16.msra.mxu0 0
    %1698 = vmatprep.subr.bf16.mxu0 0
    %1699 = vmatpush2.bf16.msra.mxu0 0
    %1700 = vmatprep.subr.bf16.mxu0 0
    %1701 = vmatpush2.bf16.msra.mxu0 0
    %1702 = vmatprep.mubr.bf16.mxu0 0
    %1703 = vmatmul.mubr.bf16.gmra.mxu0 %v1598
    %v1704 = vpop.f32.mrf.mxu0
    %v1705 = vadd.f32 %v1620, %v1704
    %v1706 = vpop.f32.mrf.mxu0
    %v1707 = vpop.f32.mrf.mxu0
    %v1708 = vadd.f32 %v1620, %v1707
    %v1709 = vpop.f32.mrf.mxu0
    %1710 = vdwg.mxu0
    %v1711 = vadd.f32 %v1705, %v1526
    %v1712 = vadd.f32 %v1708, %v1527
    %v1715 = vrot.slane %v1712, 7
    %vm1716 = vcmask 1041409
    %v1717 = vsel %vm1716, %v1715, %v1711
    %v1719 = vrot.slane %v1711, 1
    %v1720 = vsel %vm1716, %v1712, %v1719
    %1721 = vrot.lane.b32.xlu0 %v1720, 32
    %v1722 = vpop.permute.xlu0 %1721
    %v1724 = vrot.slane %v1711, 2
    %v1725 = vrot.slane %v1712, 1
    %v1726 = vsel %vm1716, %v1725, %v1724
    %1727 = vrot.lane.b32.xlu0 %v1726, 64
    %v1728 = vpop.permute.xlu0 %1727
    %v1730 = vrot.slane %v1711, 3
    %v1731 = vrot.slane %v1712, 2
    %v1732 = vsel %vm1716, %v1731, %v1730
    %1733 = vrot.lane.b32.xlu0 %v1732, 96
    %v1734 = vpop.permute.xlu0 %1733
    %v1736 = vrot.slane %v1711, 4
    %v1737 = vrot.slane %v1712, 3
    %v1738 = vsel %vm1716, %v1737, %v1736
    %v1740 = vrot.slane %v1711, 5
    %v1741 = vrot.slane %v1712, 4
    %v1742 = vsel %vm1716, %v1741, %v1740
    %1743 = vrot.lane.b32.xlu0 %v1742, 32
    %v1744 = vpop.permute.xlu0 %1743
    %v1746 = vrot.slane %v1711, 6
    %v1747 = vrot.slane %v1712, 5
    %v1748 = vsel %vm1716, %v1747, %v1746
    %1749 = vrot.lane.b32.xlu0 %v1748, 64
    %v1750 = vpop.permute.xlu0 %1749
    %v1752 = vrot.slane %v1711, 7
    %v1753 = vrot.slane %v1712, 6
    %v1754 = vsel %vm1716, %v1753, %v1752
    %1755 = vrot.lane.b32.xlu0 %v1754, 96
    %v1756 = vpop.permute.xlu0 %1755
    %v1758 = vsel %vm60, %v1717, %v1722
    %vm1759 = vcmask 523264
    %v1760 = vsel %vm1759, %v1758, %v1728
    %vm1761 = vcmask 785408
    %v1762 = vsel %vm1761, %v1760, %v1734
    %v1763 = vsel %vm60, %v1738, %v1744
    %v1764 = vsel %vm1759, %v1763, %v1750
    %v1765 = vsel %vm1761, %v1764, %v1756
    %v1768 = vcombine.low %v1762, %v1765
    %v1770 = vunpack.c.l.s4 1983009808
    %v1771 = vunpack.c.0.s8 %v1770
    %v1772 = vlaneseq
    %v1773 = vshrl.u32 %v1772, 7
    %v1774 = vsub.s32 %v1771, %v1773
    %v1775 = vrot.slane %v1768, %v1774
    %1777 = vst [vmem:[#allocation2] sm:$0xf] %v1775
    // Predicated region
    $region38: #{tpu_custom_call.1} parent=1 // pred_check
      _
    $region39: #{tpu_custom_call.1} parent=1 // pred_check_branch
      %1779 = sbr.rel (0) target = $region41
    $region40: #{tpu_custom_call.1} parent=1 // pred_region
      %s1781 = ssub.s32 64, 64
      %1782 = vsyncadd [#allocation3], %s1781
      %s1784 = sshll.u32 [#allocation2], 4
      %s1785 = int_to_ptr.vmem [resolvable:$true] %s1784
      %1787 = dma.vmem_to_hbm [thread:$0]  %s1785, 64, %s9, [#allocation3]
    $region41: #{tpu_custom_call.1} parent=1 // pred_fallthru
      _
    // Predicated region
    $region42: #{tpu_custom_call.1} parent=1 // pred_check
      _
    $region43: #{tpu_custom_call.1} parent=1 // pred_check_branch
      %1789 = sbr.rel (0) target = $region45
    $region44: #{tpu_custom_call.1} parent=1 // pred_region
      %1790 = dma.done [#allocation3], 64
    $region45: #{tpu_custom_call.1} parent=1 // pred_fallthru
      _
    %1791 = vsyncpa [#allocation3], 1

</llo_original>
